<compile_context>
chip_gen: v6e
topology: v6e:2x2x1
jax: 0.10.0
libtpu: 0.0.40
codegen_flags: <defaults>
</compile_context>

<pallas_src>
import functools

import numpy as np

import jax
import jax.numpy as jnp
from jax.experimental import pallas as pl
from jax.experimental.pallas import tpu as pltpu


# ----------------------------------------------------------------------------
# VMEM-aware tile sizing
# ----------------------------------------------------------------------------
def _vmem_caps():
    """(tile-sizing budget, scoped vmem limit) in bytes, safe on all chips."""
    try:
        cap = int(pltpu.get_tpu_info().vmem_capacity_bytes)
    except Exception:
        cap = 64 * 1024 * 1024
    # Never assume more than the 64 MiB per-core VMEM of v7x (the query may
    # report chip totals), and keep the scoped limit at <= 48 MiB so the
    # compiler has headroom on every generation.
    cap = min(cap, 64 << 20)
    vmem_limit = min(cap, 48 << 20)
    budget = max(vmem_limit - (6 << 20), 8 << 20)
    return budget, vmem_limit


def _pick_tile_h(H, bytes_per_row, budget_bytes, batch, min_steps=8):
    """Largest multiple-of-8 divisor of H whose working set fits in budget,
    then shrunk (if possible) so batch * (H // th) >= min_steps grid steps
    are available for the two v7x TensorCores."""
    if H % 8 != 0:
        return H
    divisors = [t for t in range(8, H + 1, 8) if H % t == 0]
    fitting = [t for t in divisors if t * bytes_per_row <= budget_bytes]
    th = fitting[-1] if fitting else divisors[0]
    idx = divisors.index(th)
    while idx > 0 and batch * (H // divisors[idx]) < min_steps:
        idx -= 1
    return divisors[idx]


def _round_up(x, m):
    return ((x + m - 1) // m) * m


def _pad_w(x, w_pad, value=0):
    w = x.shape[-1]
    if w == w_pad:
        return x
    pad = [(0, 0)] * (x.ndim - 1) + [(0, w_pad - w)]
    return jnp.pad(x, pad, constant_values=value)


# ----------------------------------------------------------------------------
# Small in-kernel helpers
# ----------------------------------------------------------------------------
def _scalar_slab(values):
    """Pack a few f32 scalars into row 0 of a lane-dense (8, 128) block."""
    row = jax.lax.broadcasted_iota(jnp.int32, (8, 128), 0)
    col = jax.lax.broadcasted_iota(jnp.int32, (8, 128), 1)
    slab = jnp.zeros((8, 128), jnp.float32)
    for i, v in enumerate(values):
        slab = jnp.where((row == 0) & (col == i), v, slab)
    return slab


def _to_crcb(x):
    # x: (3, TH, W) float32, channels = R, G, B
    r, g, b = x[0], x[1], x[2]
    y = 0.299 * r + 0.587 * g + 0.114 * b
    cr = (r - y) * 0.713 + 0.5
    cb = (b - y) * 0.564 + 0.5
    return cr, cb


# ----------------------------------------------------------------------------
# Fusion loss kernel (per (batch, H-tile) partial L1 sums)
# ----------------------------------------------------------------------------
def _fusion_kernel(vis_ref, ir_ref, img_ref, mask_ref, halo_ref, out_ref, *,
                   w_real):
    vis = vis_ref[0].astype(jnp.float32)           # (3, TH, W)
    ir = ir_ref[0].astype(jnp.float32)             # (3, TH, W)
    img = img_ref[0].astype(jnp.float32)           # (3, TH, W) network output
    m = mask_ref[0].astype(jnp.float32)            # (1, TH, W)
    fuse = img * m

    _, th, w = vis.shape

    # Precomputed 1-row Sobel halos: (2, 9, W) f32; channel order fuse|vis|ir.
    # Rows at the true image top/bottom are already zero (padding=1 conv).
    halo = halo_ref[...][0, 0]                     # (2, 9, W)
    top = halo[0][:, None, :]                      # (9, 1, W)
    bot = halo[1][:, None, :]                      # (9, 1, W)

    # Hoisted iota / edge masks, shared by the single concatenated Sobel pass.
    ridx = jax.lax.broadcasted_iota(jnp.int32, (1, th, w), 1)
    cidx = jax.lax.broadcasted_iota(jnp.int32, (1, th, w), 2)
    row_first = ridx == 0
    row_last = ridx == th - 1
    col_first = cidx == 0
    col_last = cidx == w - 1

    # One separable 3x3 Sobel (PyTorch cross-correlation, padding=1) over the
    # channel-concatenated slab fuse|vis|ir.
    slab = jnp.concatenate([fuse, vis, ir], axis=0)      # (9, TH, W)
    dn = pltpu.roll(slab, shift=1, axis=1)                # dn[r] = x[r-1]
    dn = jnp.where(row_first, top, dn)
    up = pltpu.roll(slab, shift=th - 1, axis=1)           # up[r] = x[r+1]
    up = jnp.where(row_last, bot, up)

    s = dn + 2.0 * slab + up                              # vertical [1, 2, 1]
    d = dn - up                                           # vertical [1, 0, -1]

    def shl(v):                                           # shl(v)[c] = v[c+1]
        return jnp.where(col_last, 0.0, pltpu.roll(v, shift=w - 1, axis=2))

    def shr(v):                                           # shr(v)[c] = v[c-1]
        return jnp.where(col_first, 0.0, pltpu.roll(v, shift=1, axis=2))

    gx = shl(s) - shr(s)                                  # horizontal [-1, 0, 1]
    gy = shr(d) + 2.0 * d + shl(d)                        # horizontal [ 1, 2, 1]

    fgx, vgx, igx = gx[0:3], gx[3:6], gx[6:9]
    fgy, vgy, igy = gy[0:3], gy[3:6], gy[6:9]

    dx = jnp.abs(fgx - jnp.maximum(vgx, igx))
    dy = jnp.abs(fgy - jnp.maximum(vgy, igy))
    if w_real != w:
        # Padded lanes carry spurious gradients near the real right edge.
        col_valid = cidx < w_real
        dx = jnp.where(col_valid, dx, 0.0)
        dy = jnp.where(col_valid, dy, 0.0)

    cr_f, cb_f = _to_crcb(fuse)
    cr_v, cb_v = _to_crcb(vis)

    s_int = jnp.sum(jnp.abs(fuse - jnp.maximum(vis, ir)))   # intensity L1 sum
    s_gx = jnp.sum(dx)                                      # grad-x L1 sum
    s_gy = jnp.sum(dy)                                      # grad-y L1 sum
    s_cb = jnp.sum(jnp.abs(cb_f - cb_v))                    # Cb L1 sum
    s_cr = jnp.sum(jnp.abs(cr_f - cr_v))                    # Cr L1 sum

    out_ref[...] = _scalar_slab((s_int, s_gx, s_gy, s_cb, s_cr))[None, None]


def fusion_loss(input_vis, input_ir, fus_img, mask, *, tile_h=None):
    B, C, H, W = input_vis.shape
    assert C == 3
    budget, vmem_limit = _vmem_caps()
    Wp = _round_up(W, 128)

    itemsize = max(jnp.dtype(input_vis.dtype).itemsize,
                   jnp.dtype(fus_img.dtype).itemsize)
    in_row = (3 * 3 + 1) * Wp * itemsize            # vis + ir + img (3ch) + mask
    live_row = 80 * Wp * 4                          # ~live f32 full-tile temporaries
    per_row = 2 * in_row + live_row                 # double-buffered inputs + live
    th = tile_h if tile_h is not None else _pick_tile_h(H, per_row, budget, B)
    if H % th != 0 or (th % 8 != 0 and th != H):
        th = H
    nh = H // th

    vis_p = _pad_w(input_vis, Wp)
    ir_p = _pad_w(input_ir, Wp)
    img_p = _pad_w(fus_img, Wp)
    msk_p = _pad_w(mask, Wp)

    # Precompute the 1-row Sobel halos per H-tile into a single small slab
    # (B, nh, 2, 9, Wp) f32; zeros at the true top/bottom image borders.
    tops = np.arange(nh) * th - 1
    bots = (np.arange(nh) + 1) * th
    top_ok = jnp.asarray((tops >= 0).astype(np.float32))
    bot_ok = jnp.asarray((bots <= H - 1).astype(np.float32))
    tops = np.clip(tops, 0, H - 1)
    bots = np.clip(bots, 0, H - 1)

    def rows(x, idx):                               # (B, C, H, Wp) -> (B, C, nh, Wp)
        return x[:, :, idx, :].astype(jnp.float32)

    def nine(idx, ok):
        f = rows(img_p, idx) * rows(msk_p, idx)     # fuse boundary rows
        s9 = jnp.concatenate([f, rows(vis_p, idx), rows(ir_p, idx)], axis=1)
        s9 = s9 * ok[None, None, :, None]
        return jnp.transpose(s9, (0, 2, 1, 3))      # (B, nh, 9, Wp)

    halo = jnp.stack([nine(tops, top_ok), nine(bots, bot_ok)], axis=2)

    main_map = lambda b, h: (b, 0, h, 0)
    img_spec = pl.BlockSpec((1, 3, th, Wp), main_map)
    msk_spec = pl.BlockSpec((1, 1, th, Wp), main_map)
    halo_spec = pl.BlockSpec((1, 1, 2, 9, Wp), lambda b, h: (b, h, 0, 0, 0))

    kernel = functools.partial(_fusion_kernel, w_real=W)
    partials = pl.pallas_call(
        kernel,
        out_shape=jax.ShapeDtypeStruct((B, nh, 8, 128), jnp.float32),
        grid_spec=pltpu.PrefetchScalarGridSpec(
            num_scalar_prefetch=0,
            grid=(B, nh),
            in_specs=[img_spec, img_spec, img_spec, msk_spec, halo_spec],
            out_specs=pl.BlockSpec((1, 1, 8, 128), lambda b, h: (b, h, 0, 0)),
        ),
        compiler_params=pltpu.CompilerParams(
            dimension_semantics=("parallel", "parallel"),
            vmem_limit_bytes=vmem_limit),
    )(vis_p, ir_p, img_p, msk_p, halo)

    sums = jnp.sum(partials[:, :, 0, :], axis=(0, 1))        # (128,)
    n_img = jnp.float32(B * 3 * H * W)                       # (B,3,H,W) tensors
    n_col = jnp.float32(B * H * W)                           # (B,1,H,W) tensors
    max_int_loss = sums[0] / n_img
    gradient_loss = 0.5 * (sums[1] / n_img) + 0.5 * (sums[2] / n_img)
    color_loss = sums[3] / n_col + sums[4] / n_col
    return 0.5 * max_int_loss + 0.2 * gradient_loss + 1.0 * color_loss


# ----------------------------------------------------------------------------
# Semantic cross-entropy (reduction='mean', ignore_index=background)
# ----------------------------------------------------------------------------
def _semantic_ce_kernel(logits_ref, labels_ref, out_ref, *, ignore_index):
    # EUP-bound (single exp slot); keep tiles as tall as VMEM allows.  A bf16
    # exp would raise EUP throughput on v6e/v7x but loosens numerics; f32 kept.
    logits = logits_ref[0].astype(jnp.float32)     # (C, TH, W)
    labels = labels_ref[0]                         # (TH, W) int32

    mx = jnp.max(logits, axis=0)                   # (TH, W)
    lse = jnp.log(jnp.sum(jnp.exp(logits - mx[None, :, :]), axis=0)) + mx
    cls_idx = jax.lax.broadcasted_iota(jnp.int32, logits.shape, 0)
    picked = jnp.sum(jnp.where(cls_idx == labels[None, :, :], logits, 0.0),
                     axis=0)                       # (TH, W)
    valid = labels != ignore_index
    # TODO(synk): labels outside [0, C) that are not ignore_index silently
    #             contribute the full lse (PyTorch would raise).
    per_pix = jnp.where(valid, lse - picked, 0.0)

    s = jnp.sum(per_pix)
    cnt = jnp.sum(valid.astype(jnp.float32))
    out_ref[...] = _scalar_slab((s, cnt))[None, None]


def semantic_loss(logits, labels, ignore_index, *, tile_h=None):
    B, C, H, W = logits.shape
    labels = labels.astype(jnp.int32)
    budget, vmem_limit = _vmem_caps()
    Wp = _round_up(W, 128)

    itemsize = jnp.dtype(logits.dtype).itemsize
    in_row = (C * itemsize + 4) * Wp                # logits + int32 labels
    live_row = 3 * C * 4 * Wp                       # f32 logits/shifted/exp temps
    per_row = 2 * in_row + live_row
    th = tile_h if tile_h is not None else _pick_tile_h(H, per_row, budget, B)
    if H % th != 0 or (th % 8 != 0 and th != H):
        th = H
    nh = H // th

    logits_p = _pad_w(logits, Wp)
    labels_p = _pad_w(labels, Wp, value=ignore_index)   # padded cols are ignored

    kernel = functools.partial(_semantic_ce_kernel, ignore_index=ignore_index)
    partials = pl.pallas_call(
        kernel,
        out_shape=jax.ShapeDtypeStruct((B, nh, 8, 128), jnp.float32),
        grid_spec=pltpu.PrefetchScalarGridSpec(
            num_scalar_prefetch=0,
            grid=(B, nh),
            in_specs=[pl.BlockSpec((1, C, th, Wp), lambda b, h: (b, 0, h, 0)),
                      pl.BlockSpec((1, th, Wp), lambda b, h: (b, h, 0))],
            out_specs=pl.BlockSpec((1, 1, 8, 128), lambda b, h: (b, h, 0, 0)),
        ),
        compiler_params=pltpu.CompilerParams(
            dimension_semantics=("parallel", "parallel"),
            vmem_limit_bytes=vmem_limit),
    )(logits_p, labels_p)

    sums = jnp.sum(partials[:, :, 0, :], axis=(0, 1))
    total, count = sums[0], sums[1]
    return jnp.where(count > 0, total / count, jnp.float32(0.0))


# ----------------------------------------------------------------------------
# MakeLoss wrapper
# ----------------------------------------------------------------------------
class MakeLoss:
    def __init__(self, background):
        self.background = background

    def __call__(self, inputs, outputs, mask, seg_label=None,
                 detect_label=None, train_mode=1):
        input_vis, input_ir = inputs
        out_semantic, out_detection, fus_img = outputs

        zero = jnp.float32(0.0)
        loss = zero
        fusion_total = zero
        semantic_total = zero
        detection_total = zero  # TODO(synk): detection branch (ultralytics TaskAlignedAssigner) not translated.

        if train_mode == 1:
            fusion_total = fusion_loss(input_vis, input_ir, fus_img, mask)
            loss = fusion_total
        elif train_mode == 3:
            semantic_total = semantic_loss(out_semantic, seg_label, self.background)
            loss = semantic_total
        elif train_mode == 5:
            fusion_total = fusion_loss(input_vis, input_ir, fus_img, mask)
            semantic_total = semantic_loss(out_semantic, seg_label, self.background)
            loss = 1.0 * semantic_total + 0.1 * fusion_total
        elif train_mode in (2, 4, 6):
            if train_mode in (4, 6):
                fusion_total = fusion_loss(input_vis, input_ir, fus_img, mask)
            if train_mode == 6 and seg_label is not None:
                semantic_total = semantic_loss(out_semantic, seg_label, self.background)
            loss = 0.01 * detection_total + 0.1 * fusion_total + 1.0 * semantic_total
        return loss, semantic_total, detection_total, fusion_total


# ----------------------------------------------------------------------------
# Pure-JAX references (correctness check only)
# ----------------------------------------------------------------------------
def _ref_fusion_loss(vis, ir, out, mask):
    fuse = out * mask

    def crcb(x):
        r, g, b = x[:, 0], x[:, 1], x[:, 2]
        y = 0.299 * r + 0.587 * g + 0.114 * b
        return (r - y) * 0.713 + 0.5, (b - y) * 0.564 + 0.5

    def sobel(x):
        H, W = x.shape[2], x.shape[3]
        xp = jnp.pad(x, ((0, 0), (0, 0), (1, 1), (1, 1)))
        kx = [[-1, 0, 1], [-2, 0, 2], [-1, 0, 1]]
        ky = [[1, 2, 1], [0, 0, 0], [-1, -2, -1]]
        gx = jnp.zeros_like(x)
        gy = jnp.zeros_like(x)
        for i in range(3):
            for j in range(3):
                win = xp[:, :, i:i + H, j:j + W]
                gx = gx + kx[i][j] * win
                gy = gy + ky[i][j] * win
        return gx, gy

    cr_f, cb_f = crcb(fuse)
    cr_v, cb_v = crcb(vis)
    fgx, fgy = sobel(fuse)
    vgx, vgy = sobel(vis)
    igx, igy = sobel(ir)
    l1 = lambda a, b: jnp.mean(jnp.abs(a - b))
    max_int = l1(fuse, jnp.maximum(vis, ir))
    grad = 0.5 * l1(fgx, jnp.maximum(vgx, igx)) + 0.5 * l1(fgy, jnp.maximum(vgy, igy))
    color = l1(cb_f, cb_v) + l1(cr_f, cr_v)
    return 0.5 * max_int + 0.2 * grad + 1.0 * color


def _ref_semantic_loss(logits, labels, ignore_index):
    logp = jax.nn.log_softmax(logits, axis=1)
    picked = jnp.take_along_axis(logp, labels[:, None, :, :], axis=1)[:, 0]
    valid = labels != ignore_index
    n = jnp.sum(valid)
    s = jnp.sum(jnp.where(valid, -picked, 0.0))
    return jnp.where(n > 0, s / n, 0.0)


def _check(name, got, want, tol=3e-5):
    got = float(got)
    want = float(want)
    if abs(got - want) > tol * max(1.0, abs(want)):
        raise AssertionError(f"{name}: pallas={got!r} ref={want!r}")


# ----------------------------------------------------------------------------
# Demo
# ----------------------------------------------------------------------------
if __name__ == "__main__":
    B, C, H, W = 2, 3, 16, 16
    NUM_CLASSES = 9
    BACKGROUND = 8

    key = jax.random.PRNGKey(0)
    k_vis, k_ir, k_fus, k_mask, k_sem, k_lbl = jax.random.split(key, 6)

    input_vis = jax.random.uniform(k_vis, (B, C, H, W), dtype=jnp.float32)
    input_ir = jax.random.uniform(k_ir, (B, C, H, W), dtype=jnp.float32)
    fus_img = jax.random.uniform(k_fus, (B, C, H, W), dtype=jnp.float32)
    mask = (jax.random.uniform(k_mask, (B, 1, H, W)) > 0.3).astype(jnp.float32)
    out_semantic = jax.random.normal(k_sem, (B, NUM_CLASSES, H, W), dtype=jnp.float32)
    seg_label = jax.random.randint(k_lbl, (B, H, W), 0, NUM_CLASSES, dtype=jnp.int32)

    # Force the multi-H-tile path (2 tiles of 8 rows) to exercise the Sobel
    # halo handling + padded-W lanes, and validate against pure-JAX references.
    fus_tiled = fusion_loss(input_vis, input_ir, fus_img, mask, tile_h=8)
    sem_tiled = semantic_loss(out_semantic, seg_label, BACKGROUND, tile_h=8)
    fus_ref = _ref_fusion_loss(input_vis, input_ir, fus_img, mask)
    sem_ref = _ref_semantic_loss(out_semantic, seg_label, BACKGROUND)
    jax.block_until_ready((fus_tiled, sem_tiled, fus_ref, sem_ref))
    _check("fusion_loss", fus_tiled, fus_ref)
    _check("semantic_loss", sem_tiled, sem_ref)

    # Full MakeLoss path with auto-picked tiles (VMEM + multi-TC aware).
    make_loss = MakeLoss(background=BACKGROUND)
    loss, sem_l, det_l, fus_l = make_loss(
        (input_vis, input_ir),
        (out_semantic, None, fus_img),
        mask,
        seg_label=seg_label,
        detect_label=None,
        train_mode=5,
    )
    jax.block_until_ready((loss, sem_l, det_l, fus_l))
    _check("make_loss", loss, 1.0 * sem_ref + 0.1 * fus_ref)
    print("KERNEL_OK")
</pallas_src>

<mosaic_0001>
module attributes {stable_mosaic.version = 11 : i64} {
  func.func @_fusion_kernel(%arg0: i32, %arg1: i32, %arg2: memref<1x3x8x128xf32, #tpu.memory_space<vmem>>, %arg3: memref<1x3x8x128xf32, #tpu.memory_space<vmem>>, %arg4: memref<1x3x8x128xf32, #tpu.memory_space<vmem>>, %arg5: memref<1x1x8x128xf32, #tpu.memory_space<vmem>>, %arg6: memref<1x1x2x9x128xf32, #tpu.memory_space<vmem>>, %arg7: memref<1x1x8x128xf32, #tpu.memory_space<vmem>>) attributes {dimension_semantics = [#tpu.dimension_semantics<parallel>, #tpu.dimension_semantics<parallel>], iteration_bounds = array<i64: 2, 2>, scalar_prefetch = 0 : i64, scratch_operands = 0 : i64, tpu.core_type = #tpu.core_type<tc>, window_params = [{transform_indices = @transform_0, window_bounds = array<i64: 1, 3, 8, 128>}, {transform_indices = @transform_1, window_bounds = array<i64: 1, 3, 8, 128>}, {transform_indices = @transform_2, window_bounds = array<i64: 1, 3, 8, 128>}, {transform_indices = @transform_3, window_bounds = array<i64: 1, 1, 8, 128>}, {transform_indices = @transform_4, window_bounds = array<i64: 1, 1, 2, 9, 128>}, {transform_indices = @transform_5, window_bounds = array<i64: 1, 1, 8, 128>}]} {
    %c0 = arith.constant 0 : index
    %c0_0 = arith.constant 0 : index
    %c0_1 = arith.constant 0 : index
    %c0_2 = arith.constant 0 : index
    %0 = vector.load %arg2[%c0, %c0_0, %c0_1, %c0_2] : memref<1x3x8x128xf32, #tpu.memory_space<vmem>>, vector<1x3x8x128xf32>
    %1 = vector.shape_cast %0 : vector<1x3x8x128xf32> to vector<3x8x128xf32>
    %c0_3 = arith.constant 0 : index
    %c0_4 = arith.constant 0 : index
    %c0_5 = arith.constant 0 : index
    %c0_6 = arith.constant 0 : index
    %2 = vector.load %arg3[%c0_3, %c0_4, %c0_5, %c0_6] : memref<1x3x8x128xf32, #tpu.memory_space<vmem>>, vector<1x3x8x128xf32>
    %3 = vector.shape_cast %2 : vector<1x3x8x128xf32> to vector<3x8x128xf32>
    %c0_7 = arith.constant 0 : index
    %c0_8 = arith.constant 0 : index
    %c0_9 = arith.constant 0 : index
    %c0_10 = arith.constant 0 : index
    %4 = vector.load %arg4[%c0_7, %c0_8, %c0_9, %c0_10] : memref<1x3x8x128xf32, #tpu.memory_space<vmem>>, vector<1x3x8x128xf32>
    %5 = vector.shape_cast %4 : vector<1x3x8x128xf32> to vector<3x8x128xf32>
    %c0_11 = arith.constant 0 : index
    %c0_12 = arith.constant 0 : index
    %c0_13 = arith.constant 0 : index
    %c0_14 = arith.constant 0 : index
    %6 = vector.load %arg5[%c0_11, %c0_12, %c0_13, %c0_14] : memref<1x1x8x128xf32, #tpu.memory_space<vmem>>, vector<1x1x8x128xf32>
    %7 = vector.shape_cast %6 : vector<1x1x8x128xf32> to vector<1x8x128xf32>
    %8 = vector.broadcast %7 : vector<1x8x128xf32> to vector<3x8x128xf32>
    %9 = arith.mulf %5, %8 : vector<3x8x128xf32>
    %c0_15 = arith.constant 0 : index
    %c0_16 = arith.constant 0 : index
    %c0_17 = arith.constant 0 : index
    %c0_18 = arith.constant 0 : index
    %c0_19 = arith.constant 0 : index
    %10 = vector.load %arg6[%c0_15, %c0_16, %c0_17, %c0_18, %c0_19] : memref<1x1x2x9x128xf32, #tpu.memory_space<vmem>>, vector<1x1x2x9x128xf32>
    %11 = vector.shape_cast %10 : vector<1x1x2x9x128xf32> to vector<2x9x128xf32>
    %12 = vector.extract_strided_slice %11 {offsets = [0, 0, 0], sizes = [1, 9, 128], strides = [1, 1, 1]} : vector<2x9x128xf32> to vector<1x9x128xf32>
    %13 = vector.shape_cast %12 : vector<1x9x128xf32> to vector<9x128xf32>
    %14 = vector.shape_cast %13 : vector<9x128xf32> to vector<9x1x128xf32>
    %15 = vector.extract_strided_slice %11 {offsets = [1, 0, 0], sizes = [1, 9, 128], strides = [1, 1, 1]} : vector<2x9x128xf32> to vector<1x9x128xf32>
    %16 = vector.shape_cast %15 : vector<1x9x128xf32> to vector<9x128xf32>
    %17 = vector.shape_cast %16 : vector<9x128xf32> to vector<9x1x128xf32>
    %18 = tpu.iota {dimensions = array<i32: 1>} : vector<1x8x128xi32>
    %19 = tpu.iota {dimensions = array<i32: 2>} : vector<1x8x128xi32>
    %c0_i32 = arith.constant 0 : i32
    %20 = vector.broadcast %c0_i32 : i32 to vector<1x8x128xi32>
    %21 = arith.cmpi eq, %18, %20 : vector<1x8x128xi32>
    %c7_i32 = arith.constant 7 : i32
    %22 = vector.broadcast %c7_i32 : i32 to vector<1x8x128xi32>
    %23 = arith.cmpi eq, %18, %22 : vector<1x8x128xi32>
    %c0_i32_20 = arith.constant 0 : i32
    %24 = vector.broadcast %c0_i32_20 : i32 to vector<1x8x128xi32>
    %25 = arith.cmpi eq, %19, %24 : vector<1x8x128xi32>
    %c127_i32 = arith.constant 127 : i32
    %26 = vector.broadcast %c127_i32 : i32 to vector<1x8x128xi32>
    %27 = arith.cmpi eq, %19, %26 : vector<1x8x128xi32>
    %28 = tpu.concatenate %9, %1, %3 in 0 : vector<3x8x128xf32>, vector<3x8x128xf32>, vector<3x8x128xf32> -> vector<9x8x128xf32>
    %c1_i32 = arith.constant 1 : i32
    %29 = tpu.dynamic_rotate %28 by %c1_i32 dim 1 : vector<9x8x128xf32>, i32 -> vector<9x8x128xf32>
    %30 = vector.shape_cast %21 : vector<1x8x128xi1> to vector<1x8x128xi1>
    %31 = vector.broadcast %30 : vector<1x8x128xi1> to vector<9x8x128xi1>
    %32 = vector.shape_cast %14 : vector<9x1x128xf32> to vector<9x1x128xf32>
    %33 = vector.broadcast %32 : vector<9x1x128xf32> to vector<9x8x128xf32>
    %34 = arith.select %31, %33, %29 : vector<9x8x128xi1>, vector<9x8x128xf32>
    %c7_i32_21 = arith.constant 7 : i32
    %35 = tpu.dynamic_rotate %28 by %c7_i32_21 dim 1 : vector<9x8x128xf32>, i32 -> vector<9x8x128xf32>
    %36 = vector.shape_cast %23 : vector<1x8x128xi1> to vector<1x8x128xi1>
    %37 = vector.broadcast %36 : vector<1x8x128xi1> to vector<9x8x128xi1>
    %38 = vector.shape_cast %17 : vector<9x1x128xf32> to vector<9x1x128xf32>
    %39 = vector.broadcast %38 : vector<9x1x128xf32> to vector<9x8x128xf32>
    %40 = arith.select %37, %39, %35 : vector<9x8x128xi1>, vector<9x8x128xf32>
    %cst = arith.constant 2.000000e+00 : f32
    %41 = vector.broadcast %cst : f32 to vector<9x8x128xf32>
    %42 = arith.mulf %41, %28 : vector<9x8x128xf32>
    %43 = arith.addf %34, %42 : vector<9x8x128xf32>
    %44 = arith.addf %43, %40 : vector<9x8x128xf32>
    %45 = arith.subf %34, %40 : vector<9x8x128xf32>
    %c127_i32_22 = arith.constant 127 : i32
    %46 = tpu.dynamic_rotate %44 by %c127_i32_22 dim 2 : vector<9x8x128xf32>, i32 -> vector<9x8x128xf32>
    %cst_23 = arith.constant 0.000000e+00 : f32
    %47 = vector.shape_cast %27 : vector<1x8x128xi1> to vector<1x8x128xi1>
    %48 = vector.broadcast %47 : vector<1x8x128xi1> to vector<9x8x128xi1>
    %49 = vector.broadcast %cst_23 : f32 to vector<9x8x128xf32>
    %50 = arith.select %48, %49, %46 : vector<9x8x128xi1>, vector<9x8x128xf32>
    %c1_i32_24 = arith.constant 1 : i32
    %51 = tpu.dynamic_rotate %44 by %c1_i32_24 dim 2 : vector<9x8x128xf32>, i32 -> vector<9x8x128xf32>
    %cst_25 = arith.constant 0.000000e+00 : f32
    %52 = vector.shape_cast %25 : vector<1x8x128xi1> to vector<1x8x128xi1>
    %53 = vector.broadcast %52 : vector<1x8x128xi1> to vector<9x8x128xi1>
    %54 = vector.broadcast %cst_25 : f32 to vector<9x8x128xf32>
    %55 = arith.select %53, %54, %51 : vector<9x8x128xi1>, vector<9x8x128xf32>
    %56 = arith.subf %50, %55 : vector<9x8x128xf32>
    %c1_i32_26 = arith.constant 1 : i32
    %57 = tpu.dynamic_rotate %45 by %c1_i32_26 dim 2 : vector<9x8x128xf32>, i32 -> vector<9x8x128xf32>
    %cst_27 = arith.constant 0.000000e+00 : f32
    %58 = vector.shape_cast %25 : vector<1x8x128xi1> to vector<1x8x128xi1>
    %59 = vector.broadcast %58 : vector<1x8x128xi1> to vector<9x8x128xi1>
    %60 = vector.broadcast %cst_27 : f32 to vector<9x8x128xf32>
    %61 = arith.select %59, %60, %57 : vector<9x8x128xi1>, vector<9x8x128xf32>
    %cst_28 = arith.constant 2.000000e+00 : f32
    %62 = vector.broadcast %cst_28 : f32 to vector<9x8x128xf32>
    %63 = arith.mulf %62, %45 : vector<9x8x128xf32>
    %64 = arith.addf %61, %63 : vector<9x8x128xf32>
    %c127_i32_29 = arith.constant 127 : i32
    %65 = tpu.dynamic_rotate %45 by %c127_i32_29 dim 2 : vector<9x8x128xf32>, i32 -> vector<9x8x128xf32>
    %cst_30 = arith.constant 0.000000e+00 : f32
    %66 = vector.shape_cast %27 : vector<1x8x128xi1> to vector<1x8x128xi1>
    %67 = vector.broadcast %66 : vector<1x8x128xi1> to vector<9x8x128xi1>
    %68 = vector.broadcast %cst_30 : f32 to vector<9x8x128xf32>
    %69 = arith.select %67, %68, %65 : vector<9x8x128xi1>, vector<9x8x128xf32>
    %70 = arith.addf %64, %69 : vector<9x8x128xf32>
    %71 = vector.extract_strided_slice %56 {offsets = [0, 0, 0], sizes = [3, 8, 128], strides = [1, 1, 1]} : vector<9x8x128xf32> to vector<3x8x128xf32>
    %72 = vector.extract_strided_slice %56 {offsets = [3, 0, 0], sizes = [3, 8, 128], strides = [1, 1, 1]} : vector<9x8x128xf32> to vector<3x8x128xf32>
    %73 = vector.extract_strided_slice %56 {offsets = [6, 0, 0], sizes = [3, 8, 128], strides = [1, 1, 1]} : vector<9x8x128xf32> to vector<3x8x128xf32>
    %74 = vector.extract_strided_slice %70 {offsets = [0, 0, 0], sizes = [3, 8, 128], strides = [1, 1, 1]} : vector<9x8x128xf32> to vector<3x8x128xf32>
    %75 = vector.extract_strided_slice %70 {offsets = [3, 0, 0], sizes = [3, 8, 128], strides = [1, 1, 1]} : vector<9x8x128xf32> to vector<3x8x128xf32>
    %76 = vector.extract_strided_slice %70 {offsets = [6, 0, 0], sizes = [3, 8, 128], strides = [1, 1, 1]} : vector<9x8x128xf32> to vector<3x8x128xf32>
    %77 = arith.maximumf %72, %73 : vector<3x8x128xf32>
    %78 = arith.subf %71, %77 : vector<3x8x128xf32>
    %79 = math.absf %78 : vector<3x8x128xf32>
    %80 = arith.maximumf %75, %76 : vector<3x8x128xf32>
    %81 = arith.subf %74, %80 : vector<3x8x128xf32>
    %82 = math.absf %81 : vector<3x8x128xf32>
    %c16_i32 = arith.constant 16 : i32
    %83 = vector.broadcast %c16_i32 : i32 to vector<1x8x128xi32>
    %84 = arith.cmpi slt, %19, %83 : vector<1x8x128xi32>
    %cst_31 = arith.constant 0.000000e+00 : f32
    %85 = vector.shape_cast %84 : vector<1x8x128xi1> to vector<1x8x128xi1>
    %86 = vector.broadcast %85 : vector<1x8x128xi1> to vector<3x8x128xi1>
    %87 = vector.broadcast %cst_31 : f32 to vector<3x8x128xf32>
    %88 = arith.select %86, %79, %87 : vector<3x8x128xi1>, vector<3x8x128xf32>
    %cst_32 = arith.constant 0.000000e+00 : f32
    %89 = vector.shape_cast %84 : vector<1x8x128xi1> to vector<1x8x128xi1>
    %90 = vector.broadcast %89 : vector<1x8x128xi1> to vector<3x8x128xi1>
    %91 = vector.broadcast %cst_32 : f32 to vector<3x8x128xf32>
    %92 = arith.select %90, %82, %91 : vector<3x8x128xi1>, vector<3x8x128xf32>
    %93 = vector.extract_strided_slice %9 {offsets = [0, 0, 0], sizes = [1, 8, 128], strides = [1, 1, 1]} : vector<3x8x128xf32> to vector<1x8x128xf32>
    %94 = vector.shape_cast %93 : vector<1x8x128xf32> to vector<8x128xf32>
    %95 = vector.extract_strided_slice %9 {offsets = [1, 0, 0], sizes = [1, 8, 128], strides = [1, 1, 1]} : vector<3x8x128xf32> to vector<1x8x128xf32>
    %96 = vector.shape_cast %95 : vector<1x8x128xf32> to vector<8x128xf32>
    %97 = vector.extract_strided_slice %9 {offsets = [2, 0, 0], sizes = [1, 8, 128], strides = [1, 1, 1]} : vector<3x8x128xf32> to vector<1x8x128xf32>
    %98 = vector.shape_cast %97 : vector<1x8x128xf32> to vector<8x128xf32>
    %cst_33 = arith.constant 2.990000e-01 : f32
    %99 = vector.broadcast %cst_33 : f32 to vector<8x128xf32>
    %100 = arith.mulf %99, %94 : vector<8x128xf32>
    %cst_34 = arith.constant 5.870000e-01 : f32
    %101 = vector.broadcast %cst_34 : f32 to vector<8x128xf32>
    %102 = arith.mulf %101, %96 : vector<8x128xf32>
    %103 = arith.addf %100, %102 : vector<8x128xf32>
    %cst_35 = arith.constant 1.140000e-01 : f32
    %104 = vector.broadcast %cst_35 : f32 to vector<8x128xf32>
    %105 = arith.mulf %104, %98 : vector<8x128xf32>
    %106 = arith.addf %103, %105 : vector<8x128xf32>
    %107 = arith.subf %94, %106 : vector<8x128xf32>
    %cst_36 = arith.constant 0.712999999 : f32
    %108 = vector.broadcast %cst_36 : f32 to vector<8x128xf32>
    %109 = arith.mulf %107, %108 : vector<8x128xf32>
    %cst_37 = arith.constant 5.000000e-01 : f32
    %110 = vector.broadcast %cst_37 : f32 to vector<8x128xf32>
    %111 = arith.addf %109, %110 : vector<8x128xf32>
    %112 = arith.subf %98, %106 : vector<8x128xf32>
    %cst_38 = arith.constant 5.640000e-01 : f32
    %113 = vector.broadcast %cst_38 : f32 to vector<8x128xf32>
    %114 = arith.mulf %112, %113 : vector<8x128xf32>
    %cst_39 = arith.constant 5.000000e-01 : f32
    %115 = vector.broadcast %cst_39 : f32 to vector<8x128xf32>
    %116 = arith.addf %114, %115 : vector<8x128xf32>
    %117 = vector.extract_strided_slice %1 {offsets = [0, 0, 0], sizes = [1, 8, 128], strides = [1, 1, 1]} : vector<3x8x128xf32> to vector<1x8x128xf32>
    %118 = vector.shape_cast %117 : vector<1x8x128xf32> to vector<8x128xf32>
    %119 = vector.extract_strided_slice %1 {offsets = [1, 0, 0], sizes = [1, 8, 128], strides = [1, 1, 1]} : vector<3x8x128xf32> to vector<1x8x128xf32>
    %120 = vector.shape_cast %119 : vector<1x8x128xf32> to vector<8x128xf32>
    %121 = vector.extract_strided_slice %1 {offsets = [2, 0, 0], sizes = [1, 8, 128], strides = [1, 1, 1]} : vector<3x8x128xf32> to vector<1x8x128xf32>
    %122 = vector.shape_cast %121 : vector<1x8x128xf32> to vector<8x128xf32>
    %cst_40 = arith.constant 2.990000e-01 : f32
    %123 = vector.broadcast %cst_40 : f32 to vector<8x128xf32>
    %124 = arith.mulf %123, %118 : vector<8x128xf32>
    %cst_41 = arith.constant 5.870000e-01 : f32
    %125 = vector.broadcast %cst_41 : f32 to vector<8x128xf32>
    %126 = arith.mulf %125, %120 : vector<8x128xf32>
    %127 = arith.addf %124, %126 : vector<8x128xf32>
    %cst_42 = arith.constant 1.140000e-01 : f32
    %128 = vector.broadcast %cst_42 : f32 to vector<8x128xf32>
    %129 = arith.mulf %128, %122 : vector<8x128xf32>
    %130 = arith.addf %127, %129 : vector<8x128xf32>
    %131 = arith.subf %118, %130 : vector<8x128xf32>
    %cst_43 = arith.constant 0.712999999 : f32
    %132 = vector.broadcast %cst_43 : f32 to vector<8x128xf32>
    %133 = arith.mulf %131, %132 : vector<8x128xf32>
    %cst_44 = arith.constant 5.000000e-01 : f32
    %134 = vector.broadcast %cst_44 : f32 to vector<8x128xf32>
    %135 = arith.addf %133, %134 : vector<8x128xf32>
    %136 = arith.subf %122, %130 : vector<8x128xf32>
    %cst_45 = arith.constant 5.640000e-01 : f32
    %137 = vector.broadcast %cst_45 : f32 to vector<8x128xf32>
    %138 = arith.mulf %136, %137 : vector<8x128xf32>
    %cst_46 = arith.constant 5.000000e-01 : f32
    %139 = vector.broadcast %cst_46 : f32 to vector<8x128xf32>
    %140 = arith.addf %138, %139 : vector<8x128xf32>
    %141 = arith.maximumf %1, %3 : vector<3x8x128xf32>
    %142 = arith.subf %9, %141 : vector<3x8x128xf32>
    %143 = math.absf %142 : vector<3x8x128xf32>
    %144 = vector.shape_cast %143 : vector<3x8x128xf32> to vector<1x3x8x128xf32>
    %cst_47 = arith.constant dense<0.000000e+00> : vector<1xf32>
    %145 = vector.multi_reduction <add>, %144, %cst_47 [1, 2, 3] : vector<1x3x8x128xf32> to vector<1xf32>
    %146 = vector.shape_cast %145 : vector<1xf32> to vector<1x1x1x1xf32>
    %147 = vector.extract %146[0, 0, 0, 0] : f32 from vector<1x1x1x1xf32>
    %148 = vector.shape_cast %88 : vector<3x8x128xf32> to vector<1x3x8x128xf32>
    %cst_48 = arith.constant dense<0.000000e+00> : vector<1xf32>
    %149 = vector.multi_reduction <add>, %148, %cst_48 [1, 2, 3] : vector<1x3x8x128xf32> to vector<1xf32>
    %150 = vector.shape_cast %149 : vector<1xf32> to vector<1x1x1x1xf32>
    %151 = vector.extract %150[0, 0, 0, 0] : f32 from vector<1x1x1x1xf32>
    %152 = vector.shape_cast %92 : vector<3x8x128xf32> to vector<1x3x8x128xf32>
    %cst_49 = arith.constant dense<0.000000e+00> : vector<1xf32>
    %153 = vector.multi_reduction <add>, %152, %cst_49 [1, 2, 3] : vector<1x3x8x128xf32> to vector<1xf32>
    %154 = vector.shape_cast %153 : vector<1xf32> to vector<1x1x1x1xf32>
    %155 = vector.extract %154[0, 0, 0, 0] : f32 from vector<1x1x1x1xf32>
    %156 = arith.subf %116, %140 : vector<8x128xf32>
    %157 = math.absf %156 : vector<8x128xf32>
    %158 = vector.shape_cast %157 : vector<8x128xf32> to vector<1x8x128xf32>
    %cst_50 = arith.constant dense<0.000000e+00> : vector<1xf32>
    %159 = vector.multi_reduction <add>, %158, %cst_50 [1, 2] : vector<1x8x128xf32> to vector<1xf32>
    %160 = vector.shape_cast %159 : vector<1xf32> to vector<1x1x1xf32>
    %161 = vector.extract %160[0, 0, 0] : f32 from vector<1x1x1xf32>
    %162 = arith.subf %111, %135 : vector<8x128xf32>
    %163 = math.absf %162 : vector<8x128xf32>
    %164 = vector.shape_cast %163 : vector<8x128xf32> to vector<1x8x128xf32>
    %cst_51 = arith.constant dense<0.000000e+00> : vector<1xf32>
    %165 = vector.multi_reduction <add>, %164, %cst_51 [1, 2] : vector<1x8x128xf32> to vector<1xf32>
    %166 = vector.shape_cast %165 : vector<1xf32> to vector<1x1x1xf32>
    %167 = vector.extract %166[0, 0, 0] : f32 from vector<1x1x1xf32>
    %168 = tpu.iota {dimensions = array<i32: 0>} : vector<8x128xi32>
    %169 = tpu.iota {dimensions = array<i32: 1>} : vector<8x128xi32>
    %cst_52 = arith.constant 0.000000e+00 : f32
    %170 = vector.broadcast %cst_52 : f32 to vector<8x128xf32>
    %c0_i32_53 = arith.constant 0 : i32
    %171 = vector.broadcast %c0_i32_53 : i32 to vector<8x128xi32>
    %172 = arith.cmpi eq, %168, %171 : vector<8x128xi32>
    %c0_i32_54 = arith.constant 0 : i32
    %173 = vector.broadcast %c0_i32_54 : i32 to vector<8x128xi32>
    %174 = arith.cmpi eq, %169, %173 : vector<8x128xi32>
    %175 = arith.andi %172, %174 : vector<8x128xi1>
    %176 = vector.broadcast %147 : f32 to vector<8x128xf32>
    %177 = arith.select %175, %176, %170 : vector<8x128xi1>, vector<8x128xf32>
    %c0_i32_55 = arith.constant 0 : i32
    %178 = vector.broadcast %c0_i32_55 : i32 to vector<8x128xi32>
    %179 = arith.cmpi eq, %168, %178 : vector<8x128xi32>
    %c1_i32_56 = arith.constant 1 : i32
    %180 = vector.broadcast %c1_i32_56 : i32 to vector<8x128xi32>
    %181 = arith.cmpi eq, %169, %180 : vector<8x128xi32>
    %182 = arith.andi %179, %181 : vector<8x128xi1>
    %183 = vector.broadcast %151 : f32 to vector<8x128xf32>
    %184 = arith.select %182, %183, %177 : vector<8x128xi1>, vector<8x128xf32>
    %c0_i32_57 = arith.constant 0 : i32
    %185 = vector.broadcast %c0_i32_57 : i32 to vector<8x128xi32>
    %186 = arith.cmpi eq, %168, %185 : vector<8x128xi32>
    %c2_i32 = arith.constant 2 : i32
    %187 = vector.broadcast %c2_i32 : i32 to vector<8x128xi32>
    %188 = arith.cmpi eq, %169, %187 : vector<8x128xi32>
    %189 = arith.andi %186, %188 : vector<8x128xi1>
    %190 = vector.broadcast %155 : f32 to vector<8x128xf32>
    %191 = arith.select %189, %190, %184 : vector<8x128xi1>, vector<8x128xf32>
    %c0_i32_58 = arith.constant 0 : i32
    %192 = vector.broadcast %c0_i32_58 : i32 to vector<8x128xi32>
    %193 = arith.cmpi eq, %168, %192 : vector<8x128xi32>
    %c3_i32 = arith.constant 3 : i32
    %194 = vector.broadcast %c3_i32 : i32 to vector<8x128xi32>
    %195 = arith.cmpi eq, %169, %194 : vector<8x128xi32>
    %196 = arith.andi %193, %195 : vector<8x128xi1>
    %197 = vector.broadcast %161 : f32 to vector<8x128xf32>
    %198 = arith.select %196, %197, %191 : vector<8x128xi1>, vector<8x128xf32>
    %c0_i32_59 = arith.constant 0 : i32
    %199 = vector.broadcast %c0_i32_59 : i32 to vector<8x128xi32>
    %200 = arith.cmpi eq, %168, %199 : vector<8x128xi32>
    %c4_i32 = arith.constant 4 : i32
    %201 = vector.broadcast %c4_i32 : i32 to vector<8x128xi32>
    %202 = arith.cmpi eq, %169, %201 : vector<8x128xi32>
    %203 = arith.andi %200, %202 : vector<8x128xi1>
    %204 = vector.broadcast %167 : f32 to vector<8x128xf32>
    %205 = arith.select %203, %204, %198 : vector<8x128xi1>, vector<8x128xf32>
    %206 = vector.shape_cast %205 : vector<8x128xf32> to vector<1x1x8x128xf32>
    %c0_60 = arith.constant 0 : index
    %c0_61 = arith.constant 0 : index
    %c0_62 = arith.constant 0 : index
    %c0_63 = arith.constant 0 : index
    %207 = vector.load %arg7[%c0_60, %c0_61, %c0_62, %c0_63] : memref<1x1x8x128xf32, #tpu.memory_space<vmem>>, vector<1x1x8x128xf32>
    tpu.vector_store %arg7[%c0_60, %c0_61, %c0_62, %c0_63], %206 {strides = array<i32>} : memref<1x1x8x128xf32, #tpu.memory_space<vmem>>, vector<1x1x8x128xf32>,
    return
  }
  func.func @transform_0(%arg0: i32, %arg1: i32) -> (i32, i32, i32, i32) {
    %c0_i32 = arith.constant 0 : i32
    %c0_i32_0 = arith.constant 0 : i32
    %c0_i32_1 = arith.constant 0 : i32
    return %arg0, %c0_i32, %arg1, %c0_i32_0 : i32, i32, i32, i32
  }
  func.func @transform_1(%arg0: i32, %arg1: i32) -> (i32, i32, i32, i32) {
    %c0_i32 = arith.constant 0 : i32
    %c0_i32_0 = arith.constant 0 : i32
    %c0_i32_1 = arith.constant 0 : i32
    return %arg0, %c0_i32, %arg1, %c0_i32_0 : i32, i32, i32, i32
  }
  func.func @transform_2(%arg0: i32, %arg1: i32) -> (i32, i32, i32, i32) {
    %c0_i32 = arith.constant 0 : i32
    %c0_i32_0 = arith.constant 0 : i32
    %c0_i32_1 = arith.constant 0 : i32
    return %arg0, %c0_i32, %arg1, %c0_i32_0 : i32, i32, i32, i32
  }
  func.func @transform_3(%arg0: i32, %arg1: i32) -> (i32, i32, i32, i32) {
    %c0_i32 = arith.constant 0 : i32
    %c0_i32_0 = arith.constant 0 : i32
    %c0_i32_1 = arith.constant 0 : i32
    return %arg0, %c0_i32, %arg1, %c0_i32_0 : i32, i32, i32, i32
  }
  func.func @transform_4(%arg0: i32, %arg1: i32) -> (i32, i32, i32, i32, i32) {
    %c0_i32 = arith.constant 0 : i32
    %c0_i32_0 = arith.constant 0 : i32
    %c0_i32_1 = arith.constant 0 : i32
    %c0_i32_2 = arith.constant 0 : i32
    return %arg0, %arg1, %c0_i32, %c0_i32_0, %c0_i32_1 : i32, i32, i32, i32, i32
  }
  func.func @transform_5(%arg0: i32, %arg1: i32) -> (i32, i32, i32, i32) {
    %c0_i32 = arith.constant 0 : i32
    %c0_i32_0 = arith.constant 0 : i32
    %c0_i32_1 = arith.constant 0 : i32
    return %arg0, %arg1, %c0_i32, %c0_i32_0 : i32, i32, i32, i32
  }
}

</mosaic_0001>

<llo_original>
// kernel: tpu_custom_call.1
$region0: #{tpu_custom_call.1}
  #allocation0 [shape = 'u32[]', space=smem, size = 0x4, offset = 0x4, fixed_abs, tag = 'smem constant byte address 0x4 - core index']
  #allocation1 [shape = 'u32[144,128]{1,0:T(1,128)}', space=vmem, size = 0x12000, scoped, tag = 'internal scratch']
  %s0 = inlined_call_operand.vmem [shape: f32[2,3,16,128], index: 0, kind: input, shape index: {}]
  %s1 = inlined_call_operand.vmem [shape: f32[2,3,16,128], index: 1, kind: input, shape index: {}]
  %s2 = inlined_call_operand.hbm [shape: f32[2,3,16,128], index: 2, kind: input, shape index: {}]
  %s3 = inlined_call_operand.hbm [shape: f32[2,1,16,128], index: 3, kind: input, shape index: {}]
  %s4 = inlined_call_operand.vmem [shape: f32[2,2,2,9,128], index: 4, kind: input, shape index: {}]
  %s5 = inlined_call_operand.hbm [shape: f32[2,2,8,128], index: 5, kind: output, shape index: {}]
  %s6 = sld [smem:[#allocation0]]
  $region137: #{tpu_custom_call.1} parent=0
    _
  %s8 = ssub.s32 1, %s6
  %s9 = scalar_select 0, %s8, %s6
  $region1: #{tpu_custom_call.1} parent=0
    #allocation2 [shape = 'u8[24576]{0}', space=vmem, size = 0x6000, scoped, tag = 'input window, operand 0']
    #allocation3 [shape = 'u8[24576]{0}', space=vmem, size = 0x6000, scoped, tag = 'input window, operand 1']
    #allocation4 [shape = 'u8[24576]{0}', space=vmem, size = 0x6000, scoped, tag = 'input window, operand 2']
    #allocation5 [shape = 's32[2]{0}', space=sflag, size = 0x8, scoped, tag = 'scoped memory for tpu_custom_call.1']
    #allocation6 [shape = 's32[2]{0}', space=sflag, size = 0x8, scoped, tag = 'scoped memory for tpu_custom_call.1']
    #allocation7 [shape = 'u8[8192]{0}', space=vmem, size = 0x2000, scoped, tag = 'input window, operand 3']
    #allocation8 [shape = 's32[2]{0}', space=sflag, size = 0x8, scoped, tag = 'scoped memory for tpu_custom_call.1']
    #allocation9 [shape = 'u8[8192]{0}', space=vmem, size = 0x2000, scoped, tag = 'output window, operand 0']
    %10 = vsyncpa [#allocation5], 0
    %s11 = scalar_lea.sflag [#allocation5], 1
    %12 = vsyncpa %s11, 0
    %13 = vsyncpa [#allocation8], 0
    %s14 = scalar_lea.sflag [#allocation8], 1
    %15 = vsyncpa %s14, 0
    %16 = vsyncpa [#allocation6], 0
    %s17 = scalar_lea.sflag [#allocation6], 1
    %18 = vsyncpa %s17, 0
    loop: start=0, step=1, limit=6
    $region2: #{tpu_custom_call.1} parent=1 // loop_pre_header
      _
    $region3: #{tpu_custom_call.1} parent=1 // loop_header
      %s20 = sphi 0, %s24
      %p21 = scmp.ge.s32.totalorder %s20, 6
      %s27 = sphi 0, %s39
      %s28 = sphi 0, %s35
      %s29 = sphi 0, %s27
      %s30 = sphi 0, %s28
      %s31 = sphi 0, %s29
      %s32 = sphi 0, %s30
      %s44 = sphi 0, %s46
      %s47 = sphi 0, %s44
      %s48 = sphi 0, %s47
      %s64 = sphi 0, %s48
      %s72 = sphi 0, %s74
      %s75 = sphi 0, %s72
      %s76 = sphi 0, %s75
      %s92 = sphi 0, %s76
      %s100 = sphi 0, %s102
      %s103 = sphi 0, %s100
      %s104 = sphi 0, %s103
      %s120 = sphi 0, %s104
      %s128 = sphi 0, %s130
      %s131 = sphi 0, %s128
      %s132 = sphi 0, %s131
      %s148 = sphi 0, %s132
      %s156 = sphi 0, %s158
      %s159 = sphi 0, %s156
      %s160 = sphi 0, %s159
      %s176 = sphi 0, %s160
      %s184 = sphi 0, %s186
      %s187 = sphi 0, %s184
      %s188 = sphi 0, %s187
      %s204 = sphi 0, %s188
    $region4: #{tpu_custom_call.1} parent=1 // loop_header_branch
      %23 = sbr.rel (%p21) target = $region8
    $region5: #{tpu_custom_call.1} parent=1 // loop_body
      %s25 = ssub.s32 %s20, 1
      %s26 = ssub.s32 %s20, 2
      %s33 = sadd.s32 1, %s28
      %p34 = scmp.ge.s32.totalorder %s33, 2
      %s35 = scalar_select %p34, 0, %s33
      %s36 = sadd.s32 1, %s27
      %s37 = scalar_select %p34, %s36, %s27
      %p38 = scmp.ge.s32.totalorder %s37, 2
      %s39 = scalar_select %p38, 0, %s37
      %s40 = ssub.s32 %s27, %s39
      %s41 = ssub.s32 %s28, %s35
      %s42 = sor.u32 %s40, %s41
      %p43 = scmp.eq.s32.totalorder %s42, 0
      %s45 = sadd.s32 %s44, 1
      %s46 = scalar_select %p43, %s44, %s45
      %p49 = pneg %p43
      %p50 = scmp.eq.s32.totalorder %s20, 3
      %p51 = por %p49, %p50
      %p52 = scmp.ne.s32.totalorder %s44, %s47
      %p53 = scmp.eq.s32.totalorder %s20, 0
      %p54 = por %p52, %p53
      %p55 = scmp.ne.s32.totalorder %s44, %s47
      %p56 = scmp.eq.s32.totalorder %s25, 3
      %p57 = por %p55, %p56
      %p58 = scmp.ne.s32.totalorder %s47, %s48
      %p59 = scmp.eq.s32.totalorder %s25, 0
      %p60 = por %p58, %p59
      %p61 = scmp.ne.s32.totalorder %s47, %s48
      %p62 = scmp.eq.s32.totalorder %s26, 3
      %p63 = por %p61, %p62
      %p65 = scmp.ne.s32.totalorder %s48, %s64
      %p66 = scmp.eq.s32.totalorder %s26, 0
      %p67 = por %p65, %p66
      %s68 = ssub.s32 %s27, %s39
      %s69 = ssub.s32 %s28, %s35
      %s70 = sor.u32 %s68, %s69
      %p71 = scmp.eq.s32.totalorder %s70, 0
      %s73 = sadd.s32 %s72, 1
      %s74 = scalar_select %p71, %s72, %s73
      %p77 = pneg %p71
      %p78 = scmp.eq.s32.totalorder %s20, 3
      %p79 = por %p77, %p78
      %p80 = scmp.ne.s32.totalorder %s72, %s75
      %p81 = scmp.eq.s32.totalorder %s20, 0
      %p82 = por %p80, %p81
      %p83 = scmp.ne.s32.totalorder %s72, %s75
      %p84 = scmp.eq.s32.totalorder %s25, 3
      %p85 = por %p83, %p84
      %p86 = scmp.ne.s32.totalorder %s75, %s76
      %p87 = scmp.eq.s32.totalorder %s25, 0
      %p88 = por %p86, %p87
      %p89 = scmp.ne.s32.totalorder %s75, %s76
      %p90 = scmp.eq.s32.totalorder %s26, 3
      %p91 = por %p89, %p90
      %p93 = scmp.ne.s32.totalorder %s76, %s92
      %p94 = scmp.eq.s32.totalorder %s26, 0
      %p95 = por %p93, %p94
      %s96 = ssub.s32 %s27, %s39
      %s97 = ssub.s32 %s28, %s35
      %s98 = sor.u32 %s96, %s97
      %p99 = scmp.eq.s32.totalorder %s98, 0
      %s101 = sadd.s32 %s100, 1
      %s102 = scalar_select %p99, %s100, %s101
      %p105 = pneg %p99
      %p106 = scmp.eq.s32.totalorder %s20, 3
      %p107 = por %p105, %p106
      %p108 = scmp.ne.s32.totalorder %s100, %s103
      %p109 = scmp.eq.s32.totalorder %s20, 0
      %p110 = por %p108, %p109
      %p111 = scmp.ne.s32.totalorder %s100, %s103
      %p112 = scmp.eq.s32.totalorder %s25, 3
      %p113 = por %p111, %p112
      %p114 = scmp.ne.s32.totalorder %s103, %s104
      %p115 = scmp.eq.s32.totalorder %s25, 0
      %p116 = por %p114, %p115
      %p117 = scmp.ne.s32.totalorder %s103, %s104
      %p118 = scmp.eq.s32.totalorder %s26, 3
      %p119 = por %p117, %p118
      %p121 = scmp.ne.s32.totalorder %s104, %s120
      %p122 = scmp.eq.s32.totalorder %s26, 0
      %p123 = por %p121, %p122
      %s124 = ssub.s32 %s27, %s39
      %s125 = ssub.s32 %s28, %s35
      %s126 = sor.u32 %s124, %s125
      %p127 = scmp.eq.s32.totalorder %s126, 0
      %s129 = sadd.s32 %s128, 1
      %s130 = scalar_select %p127, %s128, %s129
      %p133 = pneg %p127
      %p134 = scmp.eq.s32.totalorder %s20, 3
      %p135 = por %p133, %p134
      %p136 = scmp.ne.s32.totalorder %s128, %s131
      %p137 = scmp.eq.s32.totalorder %s20, 0
      %p138 = por %p136, %p137
      %p139 = scmp.ne.s32.totalorder %s128, %s131
      %p140 = scmp.eq.s32.totalorder %s25, 3
      %p141 = por %p139, %p140
      %p142 = scmp.ne.s32.totalorder %s131, %s132
      %p143 = scmp.eq.s32.totalorder %s25, 0
      %p144 = por %p142, %p143
      %p145 = scmp.ne.s32.totalorder %s131, %s132
      %p146 = scmp.eq.s32.totalorder %s26, 3
      %p147 = por %p145, %p146
      %p149 = scmp.ne.s32.totalorder %s132, %s148
      %p150 = scmp.eq.s32.totalorder %s26, 0
      %p151 = por %p149, %p150
      %s152 = ssub.s32 %s27, %s39
      %s153 = ssub.s32 %s28, %s35
      %s154 = sor.u32 %s152, %s153
      %p155 = scmp.eq.s32.totalorder %s154, 0
      %s157 = sadd.s32 %s156, 1
      %s158 = scalar_select %p155, %s156, %s157
      %p161 = pneg %p155
      %p162 = scmp.eq.s32.totalorder %s20, 3
      %p163 = por %p161, %p162
      %p164 = scmp.ne.s32.totalorder %s156, %s159
      %p165 = scmp.eq.s32.totalorder %s20, 0
      %p166 = por %p164, %p165
      %p167 = scmp.ne.s32.totalorder %s156, %s159
      %p168 = scmp.eq.s32.totalorder %s25, 3
      %p169 = por %p167, %p168
      %p170 = scmp.ne.s32.totalorder %s159, %s160
      %p171 = scmp.eq.s32.totalorder %s25, 0
      %p172 = por %p170, %p171
      %p173 = scmp.ne.s32.totalorder %s159, %s160
      %p174 = scmp.eq.s32.totalorder %s26, 3
      %p175 = por %p173, %p174
      %p177 = scmp.ne.s32.totalorder %s160, %s176
      %p178 = scmp.eq.s32.totalorder %s26, 0
      %p179 = por %p177, %p178
      %s180 = ssub.s32 %s27, %s39
      %s181 = ssub.s32 %s28, %s35
      %s182 = sor.u32 %s180, %s181
      %p183 = scmp.eq.s32.totalorder %s182, 0
      %s185 = sadd.s32 %s184, 1
      %s186 = scalar_select %p183, %s184, %s185
      %p189 = pneg %p183
      %p190 = scmp.eq.s32.totalorder %s20, 3
      %p191 = por %p189, %p190
      %p192 = scmp.ne.s32.totalorder %s184, %s187
      %p193 = scmp.eq.s32.totalorder %s20, 0
      %p194 = por %p192, %p193
      %p195 = scmp.ne.s32.totalorder %s184, %s187
      %p196 = scmp.eq.s32.totalorder %s25, 3
      %p197 = por %p195, %p196
      %p198 = scmp.ne.s32.totalorder %s187, %s188
      %p199 = scmp.eq.s32.totalorder %s25, 0
      %p200 = por %p198, %p199
      %p201 = scmp.ne.s32.totalorder %s187, %s188
      %p202 = scmp.eq.s32.totalorder %s26, 3
      %p203 = por %p201, %p202
      %p205 = scmp.ne.s32.totalorder %s188, %s204
      %p206 = scmp.eq.s32.totalorder %s26, 0
      %p207 = por %p205, %p206
      %p208 = scmp.le.s32.totalorder 1, %s20
      %p209 = scmp.lt.s32.totalorder %s20, 5
      %p210 = pnand %p208, %p209
      %p211 = pneg %p210
      // Predicated region
      $region9: #{tpu_custom_call.1} parent=5 // pred_check
        _
      $region10: #{tpu_custom_call.1} parent=5 // pred_check_branch
        %213 = sbr.rel (%p210) target = $region12
      $region11: #{tpu_custom_call.1} parent=5 // pred_region
        %s214 = ssub.s32 %s20, 1
      $region12: #{tpu_custom_call.1} parent=5 // pred_fallthru
        _
      %p215 = scmp.lt.s32.totalorder %s20, 4
      // Predicated region
      $region13: #{tpu_custom_call.1} parent=5 // pred_check
        %p216 = pneg %p215
      $region14: #{tpu_custom_call.1} parent=5 // pred_check_branch
        %218 = sbr.rel (%p216) target = $region16
      $region15: #{tpu_custom_call.1} parent=5 // pred_region
        // Predicated region
        $region17: #{tpu_custom_call.1} parent=15 // pred_check
          %p219 = pneg %p54
        $region18: #{tpu_custom_call.1} parent=15 // pred_check_branch
          %221 = sbr.rel (%p219) target = $region20
        $region19: #{tpu_custom_call.1} parent=15 // pred_region
          %s222 = sand.u32 %s44, 1
          %s223 = sand.u32 %s44, 1
          %s224 = smul.addr %s223, 24
          %s225 = scalar_lea.vmem [#allocation2], %s224
          %s226 = smul.addr %s27, 6
          %s227 = sadd.s32 %s28, %s226
          %s228 = smul.addr %s227, 8
          %s229 = scalar_lea.vmem %s0, %s228
          // Predicated region
          $region21: #{tpu_custom_call.1} parent=19 // pred_check
            _
          $region22: #{tpu_custom_call.1} parent=19 // pred_check_branch
            %231 = sbr.rel (0) target = $region24
          $region23: #{tpu_custom_call.1} parent=19 // pred_region
            // Predicated region
            $region25: #{tpu_custom_call.1} parent=23 // pred_check
              _
            $region26: #{tpu_custom_call.1} parent=23 // pred_check_branch
              %233 = sbr.rel (0) target = $region28
            $region27: #{tpu_custom_call.1} parent=23 // pred_region
              // Predicated region
              $region40: #{tpu_custom_call.1} parent=27 // pred_check
                _
              $region41: #{tpu_custom_call.1} parent=27 // pred_check_branch
                %253 = sbr.rel (0) target = $region43
              $region42: #{tpu_custom_call.1} parent=27 // pred_region
                loop: start=0, step=1, limit=1
                $region44: #{tpu_custom_call.1} parent=42 // loop_pre_header
                  _
                $region45: #{tpu_custom_call.1} parent=42 // loop_header
                  %s255 = sphi 0, %s259
                  %p256 = scmp.ge.s32.totalorder %s255, 1
                  %s260 = sphi %s229, %s229
                  %s261 = sphi %s225, %s225
                $region46: #{tpu_custom_call.1} parent=42 // loop_header_branch
                  %258 = sbr.rel (%p256) target = $region50
                $region47: #{tpu_custom_call.1} parent=42 // loop_body
                  %v262 = vld [vmem:[%s260] sm:$0xff]
                  %263 = vst [vmem:[%s261] sm:$0xff] %v262
                  %v264 = vld [vmem:[%s260 + $0x10] sm:$0xff]
                  %265 = vst [vmem:[%s261 + $0x8] sm:$0xff] %v264
                  %v266 = vld [vmem:[%s260 + $0x20] sm:$0xff]
                  %267 = vst [vmem:[%s261 + $0x10] sm:$0xff] %v266
                $region48: #{tpu_custom_call.1} parent=42 // loop_footer
                  %s259 = sadd.s32 1, %s255
                $region49: #{tpu_custom_call.1} parent=42 // loop_footer_branch
                  %254 = sbr.rel target = $region45
                $region50: #{tpu_custom_call.1} parent=42 // loop_exit
                  _
              $region43: #{tpu_custom_call.1} parent=27 // pred_fallthru
                _
              // Predicated region
              $region51: #{tpu_custom_call.1} parent=27 // pred_check
                _
              $region52: #{tpu_custom_call.1} parent=27 // pred_check_branch
                %269 = sbr.rel target = $region54
              $region53: #{tpu_custom_call.1} parent=27 // pred_region
                _
              $region54: #{tpu_custom_call.1} parent=27 // pred_fallthru
                _
            $region28: #{tpu_custom_call.1} parent=23 // pred_fallthru
              _
            // Predicated region
            $region29: #{tpu_custom_call.1} parent=23 // pred_check
              _
            $region30: #{tpu_custom_call.1} parent=23 // pred_check_branch
              %235 = sbr.rel target = $region32
            $region31: #{tpu_custom_call.1} parent=23 // pred_region
              %s237 = ssub.s32 256, 1
              loop: start=0, step=1, limit=1
              $region33: #{tpu_custom_call.1} parent=31 // loop_pre_header
                _
              $region34: #{tpu_custom_call.1} parent=31 // loop_header
                %s239 = sphi 0, %s243
                %p240 = scmp.ge.s32.totalorder %s239, 1
                %s244 = sphi %s229, %s229
                %s245 = sphi %s225, %s225
              $region35: #{tpu_custom_call.1} parent=31 // loop_header_branch
                %242 = sbr.rel (%p240) target = $region39
              $region36: #{tpu_custom_call.1} parent=31 // loop_body
                %v246 = vld [vmem:[%s244] sm:%s237]
                %247 = vst [vmem:[%s245] sm:%s237] %v246
                %v248 = vld [vmem:[%s244 + $0x10] sm:%s237]
                %249 = vst [vmem:[%s245 + $0x8] sm:%s237] %v248
                %v250 = vld [vmem:[%s244 + $0x20] sm:%s237]
                %251 = vst [vmem:[%s245 + $0x10] sm:%s237] %v250
              $region37: #{tpu_custom_call.1} parent=31 // loop_footer
                %s243 = sadd.s32 1, %s239
              $region38: #{tpu_custom_call.1} parent=31 // loop_footer_branch
                %238 = sbr.rel target = $region34
              $region39: #{tpu_custom_call.1} parent=31 // loop_exit
                _
            $region32: #{tpu_custom_call.1} parent=23 // pred_fallthru
              _
          $region24: #{tpu_custom_call.1} parent=19 // pred_fallthru
            _
          %270 = vnop
        $region20: #{tpu_custom_call.1} parent=15 // pred_fallthru
          _
        // Predicated region
        $region55: #{tpu_custom_call.1} parent=15 // pred_check
          %p271 = pneg %p82
        $region56: #{tpu_custom_call.1} parent=15 // pred_check_branch
          %273 = sbr.rel (%p271) target = $region58
        $region57: #{tpu_custom_call.1} parent=15 // pred_region
          %s274 = sand.u32 %s72, 1
          %s275 = sand.u32 %s72, 1
          %s276 = smul.addr %s275, 24
          %s277 = scalar_lea.vmem [#allocation3], %s276
          %s278 = smul.addr %s27, 6
          %s279 = sadd.s32 %s28, %s278
          %s280 = smul.addr %s279, 8
          %s281 = scalar_lea.vmem %s1, %s280
          // Predicated region
          $region59: #{tpu_custom_call.1} parent=57 // pred_check
            _
          $region60: #{tpu_custom_call.1} parent=57 // pred_check_branch
            %283 = sbr.rel (0) target = $region62
          $region61: #{tpu_custom_call.1} parent=57 // pred_region
            // Predicated region
            $region63: #{tpu_custom_call.1} parent=61 // pred_check
              _
            $region64: #{tpu_custom_call.1} parent=61 // pred_check_branch
              %285 = sbr.rel (0) target = $region66
            $region65: #{tpu_custom_call.1} parent=61 // pred_region
              // Predicated region
              $region78: #{tpu_custom_call.1} parent=65 // pred_check
                _
              $region79: #{tpu_custom_call.1} parent=65 // pred_check_branch
                %305 = sbr.rel (0) target = $region81
              $region80: #{tpu_custom_call.1} parent=65 // pred_region
                loop: start=0, step=1, limit=1
                $region82: #{tpu_custom_call.1} parent=80 // loop_pre_header
                  _
                $region83: #{tpu_custom_call.1} parent=80 // loop_header
                  %s307 = sphi 0, %s311
                  %p308 = scmp.ge.s32.totalorder %s307, 1
                  %s312 = sphi %s281, %s281
                  %s313 = sphi %s277, %s277
                $region84: #{tpu_custom_call.1} parent=80 // loop_header_branch
                  %310 = sbr.rel (%p308) target = $region88
                $region85: #{tpu_custom_call.1} parent=80 // loop_body
                  %v314 = vld [vmem:[%s312] sm:$0xff]
                  %315 = vst [vmem:[%s313] sm:$0xff] %v314
                  %v316 = vld [vmem:[%s312 + $0x10] sm:$0xff]
                  %317 = vst [vmem:[%s313 + $0x8] sm:$0xff] %v316
                  %v318 = vld [vmem:[%s312 + $0x20] sm:$0xff]
                  %319 = vst [vmem:[%s313 + $0x10] sm:$0xff] %v318
                $region86: #{tpu_custom_call.1} parent=80 // loop_footer
                  %s311 = sadd.s32 1, %s307
                $region87: #{tpu_custom_call.1} parent=80 // loop_footer_branch
                  %306 = sbr.rel target = $region83
                $region88: #{tpu_custom_call.1} parent=80 // loop_exit
                  _
              $region81: #{tpu_custom_call.1} parent=65 // pred_fallthru
                _
              // Predicated region
              $region89: #{tpu_custom_call.1} parent=65 // pred_check
                _
              $region90: #{tpu_custom_call.1} parent=65 // pred_check_branch
                %321 = sbr.rel target = $region92
              $region91: #{tpu_custom_call.1} parent=65 // pred_region
                _
              $region92: #{tpu_custom_call.1} parent=65 // pred_fallthru
                _
            $region66: #{tpu_custom_call.1} parent=61 // pred_fallthru
              _
            // Predicated region
            $region67: #{tpu_custom_call.1} parent=61 // pred_check
              _
            $region68: #{tpu_custom_call.1} parent=61 // pred_check_branch
              %287 = sbr.rel target = $region70
            $region69: #{tpu_custom_call.1} parent=61 // pred_region
              %s289 = ssub.s32 256, 1
              loop: start=0, step=1, limit=1
              $region71: #{tpu_custom_call.1} parent=69 // loop_pre_header
                _
              $region72: #{tpu_custom_call.1} parent=69 // loop_header
                %s291 = sphi 0, %s295
                %p292 = scmp.ge.s32.totalorder %s291, 1
                %s296 = sphi %s281, %s281
                %s297 = sphi %s277, %s277
              $region73: #{tpu_custom_call.1} parent=69 // loop_header_branch
                %294 = sbr.rel (%p292) target = $region77
              $region74: #{tpu_custom_call.1} parent=69 // loop_body
                %v298 = vld [vmem:[%s296] sm:%s289]
                %299 = vst [vmem:[%s297] sm:%s289] %v298
                %v300 = vld [vmem:[%s296 + $0x10] sm:%s289]
                %301 = vst [vmem:[%s297 + $0x8] sm:%s289] %v300
                %v302 = vld [vmem:[%s296 + $0x20] sm:%s289]
                %303 = vst [vmem:[%s297 + $0x10] sm:%s289] %v302
              $region75: #{tpu_custom_call.1} parent=69 // loop_footer
                %s295 = sadd.s32 1, %s291
              $region76: #{tpu_custom_call.1} parent=69 // loop_footer_branch
                %290 = sbr.rel target = $region72
              $region77: #{tpu_custom_call.1} parent=69 // loop_exit
                _
            $region70: #{tpu_custom_call.1} parent=61 // pred_fallthru
              _
          $region62: #{tpu_custom_call.1} parent=57 // pred_fallthru
            _
          %322 = vnop
        $region58: #{tpu_custom_call.1} parent=15 // pred_fallthru
          _
        // Predicated region
        $region93: #{tpu_custom_call.1} parent=15 // pred_check
          %p323 = pneg %p110
        $region94: #{tpu_custom_call.1} parent=15 // pred_check_branch
          %325 = sbr.rel (%p323) target = $region96
        $region95: #{tpu_custom_call.1} parent=15 // pred_region
          %s326 = sand.u32 %s100, 1
          %s327 = scalar_lea.sflag [#allocation5], %s326
          %s328 = sand.u32 %s100, 1
          %s329 = smul.addr %s328, 24
          %s330 = scalar_lea.vmem [#allocation4], %s329
          %s332 = ssub.s32 384, 384
          %333 = vsyncadd %s327, %s332
          %s334 = smul.addr %s27, 6
          %s335 = sadd.s32 %s28, %s334
          %s336 = smul.addr %s335, 128
          %s337 = scalar_lea.hbm %s2, %s336
          %s338 = sshll.u32 %s330, 4
          %s339 = int_to_ptr.vmem [resolvable:$true] %s338
          %344 = dma.hbm_to_vmem [thread:$0]  %s337, 384, %s339, %s327, 256, 128, 8
        $region96: #{tpu_custom_call.1} parent=15 // pred_fallthru
          _
        // Predicated region
        $region97: #{tpu_custom_call.1} parent=15 // pred_check
          %p345 = pneg %p138
        $region98: #{tpu_custom_call.1} parent=15 // pred_check_branch
          %347 = sbr.rel (%p345) target = $region100
        $region99: #{tpu_custom_call.1} parent=15 // pred_region
          %s348 = sand.u32 %s128, 1
          %s349 = scalar_lea.sflag [#allocation8], %s348
          %s350 = sand.u32 %s128, 1
          %s351 = smul.addr %s350, 8
          %s352 = scalar_lea.vmem [#allocation7], %s351
          %s354 = ssub.s32 128, 128
          %355 = vsyncadd %s349, %s354
          %s356 = smul.addr %s27, 2
          %s357 = sadd.s32 %s28, %s356
          %s358 = smul.addr %s357, 128
          %s359 = scalar_lea.hbm %s3, %s358
          %s361 = sshll.u32 %s352, 4
          %s362 = int_to_ptr.vmem [resolvable:$true] %s361
          %364 = dma.hbm_to_vmem [thread:$0]  %s359, 128, %s362, %s349
        $region100: #{tpu_custom_call.1} parent=15 // pred_fallthru
          _
        // Predicated region
        $region101: #{tpu_custom_call.1} parent=15 // pred_check
          %p365 = pneg %p166
        $region102: #{tpu_custom_call.1} parent=15 // pred_check_branch
          %367 = sbr.rel (%p365) target = $region104
        $region103: #{tpu_custom_call.1} parent=15 // pred_region
          %p368 = scmp.lt.s32.totalorder %s27, 1
          %s369 = scalar_select %p368, %s27, 1
          %p370 = scmp.lt.s32.totalorder %s28, 1
          %s371 = scalar_select %p370, %s28, 1
          %s372 = smul.addr %s371, 4
          %s373 = smul.addr %s369, 8
          %s374 = sadd.s32 %s372, %s373
          %s375 = smul.addr %s374, 8
          %s376 = scalar_lea.vmem %s4, %s375
        $region104: #{tpu_custom_call.1} parent=15 // pred_fallthru
          _
      $region16: #{tpu_custom_call.1} parent=5 // pred_fallthru
        _
      %p377 = scmp.le.s32.totalorder 1, %s20
      %p378 = scmp.lt.s32.totalorder %s20, 5
      %p379 = pnand %p377, %p378
      %p380 = pneg %p379
      // Predicated region
      $region105: #{tpu_custom_call.1} parent=5 // pred_check
        _
      $region106: #{tpu_custom_call.1} parent=5 // pred_check_branch
        %382 = sbr.rel (%p379) target = $region108
      $region107: #{tpu_custom_call.1} parent=5 // pred_region
        %s383 = ssub.s32 %s20, 1
        %s384 = sand.u32 %s47, 1
        %s385 = sand.u32 %s47, 1
        %s386 = smul.addr %s385, 24
        %s387 = scalar_lea.vmem [#allocation2], %s386
        // Predicated region
        $region109: #{tpu_custom_call.1} parent=107 // pred_check
          %p388 = pneg %p60
        $region110: #{tpu_custom_call.1} parent=107 // pred_check_branch
          %390 = sbr.rel (%p388) target = $region112
        $region111: #{tpu_custom_call.1} parent=107 // pred_region
          _
        $region112: #{tpu_custom_call.1} parent=107 // pred_fallthru
          _
        %s391 = sand.u32 %s75, 1
        %s392 = sand.u32 %s75, 1
        %s393 = smul.addr %s392, 24
        %s394 = scalar_lea.vmem [#allocation3], %s393
        // Predicated region
        $region113: #{tpu_custom_call.1} parent=107 // pred_check
          %p395 = pneg %p88
        $region114: #{tpu_custom_call.1} parent=107 // pred_check_branch
          %397 = sbr.rel (%p395) target = $region116
        $region115: #{tpu_custom_call.1} parent=107 // pred_region
          _
        $region116: #{tpu_custom_call.1} parent=107 // pred_fallthru
          _
        %s398 = sand.u32 %s103, 1
        %s399 = scalar_lea.sflag [#allocation5], %s398
        %s400 = sand.u32 %s103, 1
        %s401 = smul.addr %s400, 24
        %s402 = scalar_lea.vmem [#allocation4], %s401
        // Predicated region
        $region117: #{tpu_custom_call.1} parent=107 // pred_check
          %p403 = pneg %p116
        $region118: #{tpu_custom_call.1} parent=107 // pred_check_branch
          %405 = sbr.rel (%p403) target = $region120
        $region119: #{tpu_custom_call.1} parent=107 // pred_region
          %406 = dma.done %s399, 384
        $region120: #{tpu_custom_call.1} parent=107 // pred_fallthru
          _
        %s407 = sand.u32 %s131, 1
        %s408 = scalar_lea.sflag [#allocation8], %s407
        %s409 = sand.u32 %s131, 1
        %s410 = smul.addr %s409, 8
        %s411 = scalar_lea.vmem [#allocation7], %s410
        // Predicated region
        $region121: #{tpu_custom_call.1} parent=107 // pred_check
          %p412 = pneg %p144
        $region122: #{tpu_custom_call.1} parent=107 // pred_check_branch
          %414 = sbr.rel (%p412) target = $region124
        $region123: #{tpu_custom_call.1} parent=107 // pred_region
          %415 = dma.done %s408, 128
        $region124: #{tpu_custom_call.1} parent=107 // pred_fallthru
          _
        %s416 = sand.u32 %s47, 1
        %s417 = sand.u32 %s47, 1
        %s418 = smul.addr %s417, 24
        %s419 = scalar_lea.vmem [#allocation2], %s418
        %p420 = pneg %p60
        %p421 = pneg %p57
        %s422 = sand.u32 %s75, 1
        %s423 = sand.u32 %s75, 1
        %s424 = smul.addr %s423, 24
        %s425 = scalar_lea.vmem [#allocation3], %s424
        %p426 = pneg %p88
        %p427 = pneg %p85
        %s428 = sand.u32 %s103, 1
        %s429 = scalar_lea.sflag [#allocation5], %s428
        %s430 = sand.u32 %s103, 1
        %s431 = smul.addr %s430, 24
        %s432 = scalar_lea.vmem [#allocation4], %s431
        %p433 = pneg %p116
        %p434 = pneg %p113
        %s435 = sand.u32 %s131, 1
        %s436 = scalar_lea.sflag [#allocation8], %s435
        %s437 = sand.u32 %s131, 1
        %s438 = smul.addr %s437, 8
        %s439 = scalar_lea.vmem [#allocation7], %s438
        %p440 = pneg %p144
        %p441 = pneg %p141
        %p442 = scmp.lt.s32.totalorder %s29, 1
        %s443 = scalar_select %p442, %s29, 1
        %p444 = scmp.lt.s32.totalorder %s30, 1
        %s445 = scalar_select %p444, %s30, 1
        %s446 = smul.addr %s445, 4
        %s447 = smul.addr %s443, 8
        %s448 = sadd.s32 %s446, %s447
        %s449 = smul.addr %s448, 8
        %s450 = scalar_lea.vmem %s4, %s449
        %p451 = pneg %p172
        %p452 = pneg %p169
        %p453 = pneg %p200
        %p454 = pneg %p197
        %s455 = sand.u32 %s187, 1
        %s456 = scalar_lea.sflag [#allocation6], %s455
        %s457 = sand.u32 %s187, 1
        %s458 = smul.addr %s457, 8
        %s459 = scalar_lea.vmem [#allocation9], %s458
        %p460 = scmp.lt.s32.totalorder %s29, 1
        %s461 = scalar_select %p460, %s29, 1
        %p462 = scmp.lt.s32.totalorder %s30, 1
        %s463 = scalar_select %p462, %s30, 1
        %s464 = smul.addr %s463, 4
        %s465 = smul.addr %s461, 8
        %s466 = sadd.s32 %s464, %s465
        %s467 = smul.addr %s466, 8
        %s468 = scalar_lea.vmem %s4, %s467
        %v469 = vld [vmem:[%s387] sm:$0xff]
        %v470 = vld [vmem:[%s387 + $0x8] sm:$0xff]
        %v471 = vld [vmem:[%s387 + $0x10] sm:$0xff]
        %v472 = vld [vmem:[%s394] sm:$0xff]
        %v473 = vld [vmem:[%s394 + $0x8] sm:$0xff]
        %v474 = vld [vmem:[%s394 + $0x10] sm:$0xff]
        %v475 = vld [vmem:[%s402] sm:$0xff]
        %v476 = vld [vmem:[%s402 + $0x8] sm:$0xff]
        %v477 = vld [vmem:[%s402 + $0x10] sm:$0xff]
        %v478 = vld [vmem:[%s411] sm:$0xff]
        %v479 = vmul.f32 %v475, %v478
        %v480 = vmul.f32 %v476, %v478
        %v481 = vmul.f32 %v477, %v478
        %v482 = vld [vmem:[%s468] sm:$0xff]
        %v483 = vld [vmem:[%s468 + $0x8] sm:$0x1]
        %v484 = vld [vmem:[%s468 + $0x10] sm:$0xff]
        %v485 = vld [vmem:[%s468 + $0x18] sm:$0x1]
        %v488 = vcombine.high %v482, %v482
        %v490 = vunpack.c.l.s4 1966171168
        %v491 = vunpack.c.0.s8 %v490
        %v492 = vlaneseq
        %v493 = vshrl.u32 %v492, 7
        %v494 = vsub.s32 %v491, %v493
        %v495 = vrot.slane %v482, %v494
        %v497 = vunpack.c.l.s4 1966171168
        %v498 = vunpack.c.0.s8 %v497
        %v499 = vlaneseq
        %v500 = vshrl.u32 %v499, 7
        %v501 = vsub.s32 %v498, %v500
        %v502 = vrot.slane %v488, %v501
        %v503 = vcombine.high %v495, %v495
        %v504 = vcombine.high %v502, %v502
        %v506 = vunpack.c.l.s4 1966171168
        %v507 = vunpack.c.0.s8 %v506
        %v508 = vlaneseq
        %v509 = vshrl.u32 %v508, 7
        %v510 = vsub.s32 %v507, %v509
        %v511 = vrot.slane %v495, %v510
        %v513 = vunpack.c.l.s4 1966171168
        %v514 = vunpack.c.0.s8 %v513
        %v515 = vlaneseq
        %v516 = vshrl.u32 %v515, 7
        %v517 = vsub.s32 %v514, %v516
        %v518 = vrot.slane %v502, %v517
        %v520 = vunpack.c.l.s4 1966171168
        %v521 = vunpack.c.0.s8 %v520
        %v522 = vlaneseq
        %v523 = vshrl.u32 %v522, 7
        %v524 = vsub.s32 %v521, %v523
        %v525 = vrot.slane %v503, %v524
        %v527 = vunpack.c.l.s4 1966171168
        %v528 = vunpack.c.0.s8 %v527
        %v529 = vlaneseq
        %v530 = vshrl.u32 %v529, 7
        %v531 = vsub.s32 %v528, %v530
        %v532 = vrot.slane %v504, %v531
        %v533 = vcombine.high %v511, %v511
        %v534 = vcombine.high %v518, %v518
        %v535 = vcombine.high %v525, %v525
        %v536 = vcombine.high %v532, %v532
        %v538 = vunpack.c.l.s4 1966171168
        %v539 = vunpack.c.0.s8 %v538
        %v540 = vlaneseq
        %v541 = vshrl.u32 %v540, 7
        %v542 = vsub.s32 %v539, %v541
        %v543 = vrot.slane %v483, %v542
        %v545 = vunpack.c.l.s4 1966171168
        %v546 = vunpack.c.0.s8 %v545
        %v547 = vlaneseq
        %v548 = vshrl.u32 %v547, 7
        %v549 = vsub.s32 %v546, %v548
        %v550 = vrot.slane %v543, %v549
        %v553 = vcombine.high %v484, %v484
        %v555 = vunpack.c.l.s4 1966171168
        %v556 = vunpack.c.0.s8 %v555
        %v557 = vlaneseq
        %v558 = vshrl.u32 %v557, 7
        %v559 = vsub.s32 %v556, %v558
        %v560 = vrot.slane %v484, %v559
        %v562 = vunpack.c.l.s4 1966171168
        %v563 = vunpack.c.0.s8 %v562
        %v564 = vlaneseq
        %v565 = vshrl.u32 %v564, 7
        %v566 = vsub.s32 %v563, %v565
        %v567 = vrot.slane %v553, %v566
        %v568 = vcombine.high %v560, %v560
        %v569 = vcombine.high %v567, %v567
        %v571 = vunpack.c.l.s4 1966171168
        %v572 = vunpack.c.0.s8 %v571
        %v573 = vlaneseq
        %v574 = vshrl.u32 %v573, 7
        %v575 = vsub.s32 %v572, %v574
        %v576 = vrot.slane %v560, %v575
        %v578 = vunpack.c.l.s4 1966171168
        %v579 = vunpack.c.0.s8 %v578
        %v580 = vlaneseq
        %v581 = vshrl.u32 %v580, 7
        %v582 = vsub.s32 %v579, %v581
        %v583 = vrot.slane %v567, %v582
        %v585 = vunpack.c.l.s4 1966171168
        %v586 = vunpack.c.0.s8 %v585
        %v587 = vlaneseq
        %v588 = vshrl.u32 %v587, 7
        %v589 = vsub.s32 %v586, %v588
        %v590 = vrot.slane %v568, %v589
        %v592 = vunpack.c.l.s4 1966171168
        %v593 = vunpack.c.0.s8 %v592
        %v594 = vlaneseq
        %v595 = vshrl.u32 %v594, 7
        %v596 = vsub.s32 %v593, %v595
        %v597 = vrot.slane %v569, %v596
        %v598 = vcombine.high %v576, %v576
        %v599 = vcombine.high %v583, %v583
        %v600 = vcombine.high %v590, %v590
        %v601 = vcombine.high %v597, %v597
        %v603 = vunpack.c.l.s4 1966171168
        %v604 = vunpack.c.0.s8 %v603
        %v605 = vlaneseq
        %v606 = vshrl.u32 %v605, 7
        %v607 = vsub.s32 %v604, %v606
        %v608 = vrot.slane %v485, %v607
        %v610 = vunpack.c.l.s4 1966171168
        %v611 = vunpack.c.0.s8 %v610
        %v612 = vlaneseq
        %v613 = vshrl.u32 %v612, 7
        %v614 = vsub.s32 %v611, %v613
        %v615 = vrot.slane %v608, %v614
        %v616 = vlaneseq
        %v617 = vshrl.u32 %v616, 7
        %v618 = vlaneseq
        %v619 = vand.u32 %v618, 127
        %vm620 = vcmp.eq.s32.totalorder %v617, 0
        %vm621 = vcmp.eq.s32.totalorder %v617, 7
        %vm622 = vcmp.eq.s32.totalorder %v619, 0
        %vm623 = vcmp.eq.s32.totalorder %v619, 127
        %v624 = vrot.slane %v479, 7
        %v625 = vrot.slane %v480, 7
        %v626 = vrot.slane %v481, 7
        %v627 = vrot.slane %v469, 7
        %v628 = vrot.slane %v470, 7
        %v629 = vrot.slane %v471, 7
        %v630 = vrot.slane %v472, 7
        %v631 = vrot.slane %v473, 7
        %v632 = vrot.slane %v474, 7
        %v633 = vsel %vm620, 1, 0
        %vm634 = vcmp.eq.s32.totalorder %v633, 1
        %v635 = vlaneseq
        %v636 = vshrl.u32 %v635, 7
        %v637 = vsub.s32 0, %v636
        %v638 = vrot.slane %v511, %v637
        %v639 = vlaneseq
        %v640 = vshrl.u32 %v639, 7
        %v641 = vsub.s32 0, %v640
        %v642 = vrot.slane %v525, %v641
        %v643 = vlaneseq
        %v644 = vshrl.u32 %v643, 7
        %v645 = vsub.s32 0, %v644
        %v646 = vrot.slane %v533, %v645
        %v647 = vlaneseq
        %v648 = vshrl.u32 %v647, 7
        %v649 = vsub.s32 0, %v648
        %v650 = vrot.slane %v535, %v649
        %v651 = vlaneseq
        %v652 = vshrl.u32 %v651, 7
        %v653 = vsub.s32 0, %v652
        %v654 = vrot.slane %v518, %v653
        %v655 = vlaneseq
        %v656 = vshrl.u32 %v655, 7
        %v657 = vsub.s32 0, %v656
        %v658 = vrot.slane %v532, %v657
        %v659 = vlaneseq
        %v660 = vshrl.u32 %v659, 7
        %v661 = vsub.s32 0, %v660
        %v662 = vrot.slane %v534, %v661
        %v663 = vlaneseq
        %v664 = vshrl.u32 %v663, 7
        %v665 = vsub.s32 0, %v664
        %v666 = vrot.slane %v536, %v665
        %v667 = vlaneseq
        %v668 = vshrl.u32 %v667, 7
        %v669 = vsub.s32 0, %v668
        %v670 = vrot.slane %v550, %v669
        %v680 = vsel %vm634, %v638, %v624
        %v681 = vsel %vm634, %v642, %v625
        %v682 = vsel %vm634, %v646, %v626
        %v683 = vsel %vm634, %v650, %v627
        %v684 = vsel %vm634, %v654, %v628
        %v685 = vsel %vm634, %v658, %v629
        %v686 = vsel %vm634, %v662, %v630
        %v687 = vsel %vm634, %v666, %v631
        %v688 = vsel %vm634, %v670, %v632
        %v689 = vrot.slane %v479, 1
        %v690 = vrot.slane %v480, 1
        %v691 = vrot.slane %v481, 1
        %v692 = vrot.slane %v469, 1
        %v693 = vrot.slane %v470, 1
        %v694 = vrot.slane %v471, 1
        %v695 = vrot.slane %v472, 1
        %v696 = vrot.slane %v473, 1
        %v697 = vrot.slane %v474, 1
        %v698 = vsel %vm621, 1, 0
        %vm699 = vcmp.eq.s32.totalorder %v698, 1
        %v700 = vlaneseq
        %v701 = vshrl.u32 %v700, 7
        %v702 = vsub.s32 0, %v701
        %v703 = vrot.slane %v576, %v702
        %v704 = vlaneseq
        %v705 = vshrl.u32 %v704, 7
        %v706 = vsub.s32 0, %v705
        %v707 = vrot.slane %v590, %v706
        %v708 = vlaneseq
        %v709 = vshrl.u32 %v708, 7
        %v710 = vsub.s32 0, %v709
        %v711 = vrot.slane %v598, %v710
        %v712 = vlaneseq
        %v713 = vshrl.u32 %v712, 7
        %v714 = vsub.s32 0, %v713
        %v715 = vrot.slane %v600, %v714
        %v716 = vlaneseq
        %v717 = vshrl.u32 %v716, 7
        %v718 = vsub.s32 0, %v717
        %v719 = vrot.slane %v583, %v718
        %v720 = vlaneseq
        %v721 = vshrl.u32 %v720, 7
        %v722 = vsub.s32 0, %v721
        %v723 = vrot.slane %v597, %v722
        %v724 = vlaneseq
        %v725 = vshrl.u32 %v724, 7
        %v726 = vsub.s32 0, %v725
        %v727 = vrot.slane %v599, %v726
        %v728 = vlaneseq
        %v729 = vshrl.u32 %v728, 7
        %v730 = vsub.s32 0, %v729
        %v731 = vrot.slane %v601, %v730
        %v732 = vlaneseq
        %v733 = vshrl.u32 %v732, 7
        %v734 = vsub.s32 0, %v733
        %v735 = vrot.slane %v615, %v734
        %v745 = vsel %vm699, %v703, %v689
        %v746 = vsel %vm699, %v707, %v690
        %v747 = vsel %vm699, %v711, %v691
        %v748 = vsel %vm699, %v715, %v692
        %v749 = vsel %vm699, %v719, %v693
        %v750 = vsel %vm699, %v723, %v694
        %v751 = vsel %vm699, %v727, %v695
        %v752 = vsel %vm699, %v731, %v696
        %v753 = vsel %vm699, %v735, %v697
        %v754 = vmul.f32 %v479, 2.0
        %v755 = vmul.f32 %v480, 2.0
        %v756 = vmul.f32 %v481, 2.0
        %v757 = vmul.f32 %v469, 2.0
        %v758 = vmul.f32 %v470, 2.0
        %v759 = vmul.f32 %v471, 2.0
        %v760 = vmul.f32 %v472, 2.0
        %v761 = vmul.f32 %v473, 2.0
        %v762 = vmul.f32 %v474, 2.0
        %v763 = vadd.f32 %v680, %v754
        %v764 = vadd.f32 %v681, %v755
        %v765 = vadd.f32 %v682, %v756
        %v766 = vadd.f32 %v683, %v757
        %v767 = vadd.f32 %v684, %v758
        %v768 = vadd.f32 %v685, %v759
        %v769 = vadd.f32 %v686, %v760
        %v770 = vadd.f32 %v687, %v761
        %v771 = vadd.f32 %v688, %v762
        %v772 = vadd.f32 %v763, %v745
        %v773 = vadd.f32 %v764, %v746
        %v774 = vadd.f32 %v765, %v747
        %v775 = vadd.f32 %v766, %v748
        %v776 = vadd.f32 %v767, %v749
        %v777 = vadd.f32 %v768, %v750
        %v778 = vadd.f32 %v769, %v751
        %v779 = vadd.f32 %v770, %v752
        %v780 = vadd.f32 %v771, %v753
        %v781 = vsub.f32 %v680, %v745
        %v782 = vsub.f32 %v681, %v746
        %v783 = vsub.f32 %v682, %v747
        %v784 = vsub.f32 %v683, %v748
        %v785 = vsub.f32 %v684, %v749
        %v786 = vsub.f32 %v685, %v750
        %v787 = vsub.f32 %v686, %v751
        %v788 = vsub.f32 %v687, %v752
        %v789 = vsub.f32 %v688, %v753
        %790 = vrot.lane.b32.xlu0 %v772, 127
        %v791 = vpop.permute.xlu0 %790
        %792 = vrot.lane.b32.xlu0 %v773, 127
        %v793 = vpop.permute.xlu0 %792
        %794 = vrot.lane.b32.xlu0 %v774, 127
        %v795 = vpop.permute.xlu0 %794
        %796 = vrot.lane.b32.xlu0 %v775, 127
        %v797 = vpop.permute.xlu0 %796
        %798 = vrot.lane.b32.xlu0 %v776, 127
        %v799 = vpop.permute.xlu0 %798
        %800 = vrot.lane.b32.xlu0 %v777, 127
        %v801 = vpop.permute.xlu0 %800
        %802 = vrot.lane.b32.xlu0 %v778, 127
        %v803 = vpop.permute.xlu0 %802
        %804 = vrot.lane.b32.xlu0 %v779, 127
        %v805 = vpop.permute.xlu0 %804
        %806 = vrot.lane.b32.xlu0 %v780, 127
        %v807 = vpop.permute.xlu0 %806
        %v808 = vsel %vm623, 1, 0
        %vm809 = vcmp.eq.s32.totalorder %v808, 1
        %v810 = vsel %vm809, 0.0, %v791
        %v811 = vsel %vm809, 0.0, %v793
        %v812 = vsel %vm809, 0.0, %v795
        %v813 = vsel %vm809, 0.0, %v797
        %v814 = vsel %vm809, 0.0, %v799
        %v815 = vsel %vm809, 0.0, %v801
        %v816 = vsel %vm809, 0.0, %v803
        %v817 = vsel %vm809, 0.0, %v805
        %v818 = vsel %vm809, 0.0, %v807
        %819 = vrot.lane.b32.xlu0 %v772, 1
        %v820 = vpop.permute.xlu0 %819
        %821 = vrot.lane.b32.xlu0 %v773, 1
        %v822 = vpop.permute.xlu0 %821
        %823 = vrot.lane.b32.xlu0 %v774, 1
        %v824 = vpop.permute.xlu0 %823
        %825 = vrot.lane.b32.xlu0 %v775, 1
        %v826 = vpop.permute.xlu0 %825
        %827 = vrot.lane.b32.xlu0 %v776, 1
        %v828 = vpop.permute.xlu0 %827
        %829 = vrot.lane.b32.xlu0 %v777, 1
        %v830 = vpop.permute.xlu0 %829
        %831 = vrot.lane.b32.xlu0 %v778, 1
        %v832 = vpop.permute.xlu0 %831
        %833 = vrot.lane.b32.xlu0 %v779, 1
        %v834 = vpop.permute.xlu0 %833
        %835 = vrot.lane.b32.xlu0 %v780, 1
        %v836 = vpop.permute.xlu0 %835
        %v837 = vsel %vm622, 1, 0
        %vm838 = vcmp.eq.s32.totalorder %v837, 1
        %v839 = vsel %vm838, 0.0, %v820
        %v840 = vsel %vm838, 0.0, %v822
        %v841 = vsel %vm838, 0.0, %v824
        %v842 = vsel %vm838, 0.0, %v826
        %v843 = vsel %vm838, 0.0, %v828
        %v844 = vsel %vm838, 0.0, %v830
        %v845 = vsel %vm838, 0.0, %v832
        %v846 = vsel %vm838, 0.0, %v834
        %v847 = vsel %vm838, 0.0, %v836
        %v848 = vsub.f32 %v810, %v839
        %v849 = vsub.f32 %v811, %v840
        %v850 = vsub.f32 %v812, %v841
        %v851 = vsub.f32 %v813, %v842
        %v852 = vsub.f32 %v814, %v843
        %v853 = vsub.f32 %v815, %v844
        %v854 = vsub.f32 %v816, %v845
        %v855 = vsub.f32 %v817, %v846
        %v856 = vsub.f32 %v818, %v847
        %857 = vrot.lane.b32.xlu0 %v781, 1
        %v858 = vpop.permute.xlu0 %857
        %859 = vrot.lane.b32.xlu0 %v782, 1
        %v860 = vpop.permute.xlu0 %859
        %861 = vrot.lane.b32.xlu0 %v783, 1
        %v862 = vpop.permute.xlu0 %861
        %863 = vrot.lane.b32.xlu0 %v784, 1
        %v864 = vpop.permute.xlu0 %863
        %865 = vrot.lane.b32.xlu0 %v785, 1
        %v866 = vpop.permute.xlu0 %865
        %867 = vrot.lane.b32.xlu0 %v786, 1
        %v868 = vpop.permute.xlu0 %867
        %869 = vrot.lane.b32.xlu0 %v787, 1
        %v870 = vpop.permute.xlu0 %869
        %871 = vrot.lane.b32.xlu0 %v788, 1
        %v872 = vpop.permute.xlu0 %871
        %873 = vrot.lane.b32.xlu0 %v789, 1
        %v874 = vpop.permute.xlu0 %873
        %v875 = vsel %vm838, 0.0, %v858
        %v876 = vsel %vm838, 0.0, %v860
        %v877 = vsel %vm838, 0.0, %v862
        %v878 = vsel %vm838, 0.0, %v864
        %v879 = vsel %vm838, 0.0, %v866
        %v880 = vsel %vm838, 0.0, %v868
        %v881 = vsel %vm838, 0.0, %v870
        %v882 = vsel %vm838, 0.0, %v872
        %v883 = vsel %vm838, 0.0, %v874
        %v884 = vmul.f32 %v781, 2.0
        %v885 = vmul.f32 %v782, 2.0
        %v886 = vmul.f32 %v783, 2.0
        %v887 = vmul.f32 %v784, 2.0
        %v888 = vmul.f32 %v785, 2.0
        %v889 = vmul.f32 %v786, 2.0
        %v890 = vmul.f32 %v787, 2.0
        %v891 = vmul.f32 %v788, 2.0
        %v892 = vmul.f32 %v789, 2.0
        %v893 = vadd.f32 %v875, %v884
        %v894 = vadd.f32 %v876, %v885
        %v895 = vadd.f32 %v877, %v886
        %v896 = vadd.f32 %v878, %v887
        %v897 = vadd.f32 %v879, %v888
        %v898 = vadd.f32 %v880, %v889
        %v899 = vadd.f32 %v881, %v890
        %v900 = vadd.f32 %v882, %v891
        %v901 = vadd.f32 %v883, %v892
        %902 = vrot.lane.b32.xlu0 %v781, 127
        %v903 = vpop.permute.xlu0 %902
        %904 = vrot.lane.b32.xlu0 %v782, 127
        %v905 = vpop.permute.xlu0 %904
        %906 = vrot.lane.b32.xlu0 %v783, 127
        %v907 = vpop.permute.xlu0 %906
        %908 = vrot.lane.b32.xlu0 %v784, 127
        %v909 = vpop.permute.xlu0 %908
        %910 = vrot.lane.b32.xlu0 %v785, 127
        %v911 = vpop.permute.xlu0 %910
        %912 = vrot.lane.b32.xlu0 %v786, 127
        %v913 = vpop.permute.xlu0 %912
        %914 = vrot.lane.b32.xlu0 %v787, 127
        %v915 = vpop.permute.xlu0 %914
        %916 = vrot.lane.b32.xlu0 %v788, 127
        %v917 = vpop.permute.xlu0 %916
        %918 = vrot.lane.b32.xlu0 %v789, 127
        %v919 = vpop.permute.xlu0 %918
        %v920 = vsel %vm809, 0.0, %v903
        %v921 = vsel %vm809, 0.0, %v905
        %v922 = vsel %vm809, 0.0, %v907
        %v923 = vsel %vm809, 0.0, %v909
        %v924 = vsel %vm809, 0.0, %v911
        %v925 = vsel %vm809, 0.0, %v913
        %v926 = vsel %vm809, 0.0, %v915
        %v927 = vsel %vm809, 0.0, %v917
        %v928 = vsel %vm809, 0.0, %v919
        %v929 = vadd.f32 %v893, %v920
        %v930 = vadd.f32 %v894, %v921
        %v931 = vadd.f32 %v895, %v922
        %v932 = vadd.f32 %v896, %v923
        %v933 = vadd.f32 %v897, %v924
        %v934 = vadd.f32 %v898, %v925
        %v935 = vadd.f32 %v899, %v926
        %v936 = vadd.f32 %v900, %v927
        %v937 = vadd.f32 %v901, %v928
        %v938 = vmax.f32 %v851, %v854
        %v939 = vmax.f32 %v852, %v855
        %v940 = vmax.f32 %v853, %v856
        %v941 = vsub.f32 %v848, %v938
        %v942 = vsub.f32 %v849, %v939
        %v943 = vsub.f32 %v850, %v940
        %v944 = vand.u32 2147483647, %v941
        %v945 = vand.u32 2147483647, %v942
        %v946 = vand.u32 2147483647, %v943
        %v947 = vmax.f32 %v932, %v935
        %v948 = vmax.f32 %v933, %v936
        %v949 = vmax.f32 %v934, %v937
        %v950 = vsub.f32 %v929, %v947
        %v951 = vsub.f32 %v930, %v948
        %v952 = vsub.f32 %v931, %v949
        %v953 = vand.u32 2147483647, %v950
        %v954 = vand.u32 2147483647, %v951
        %v955 = vand.u32 2147483647, %v952
        %vm956 = vcmp.lt.s32.totalorder %v619, 16
        %v957 = vsel %vm956, 1, 0
        %vm958 = vcmp.eq.s32.totalorder %v957, 1
        %v959 = vsel %vm958, %v944, 0.0
        %v960 = vsel %vm958, %v945, 0.0
        %v961 = vsel %vm958, %v946, 0.0
        %v962 = vsel %vm958, %v953, 0.0
        %v963 = vsel %vm958, %v954, 0.0
        %v964 = vsel %vm958, %v955, 0.0
        %v965 = vmul.f32 %v479, 0.299
        %v966 = vmul.f32 %v480, 0.587
        %v967 = vadd.f32 %v965, %v966
        %v968 = vmul.f32 %v481, 0.114
        %v969 = vadd.f32 %v967, %v968
        %v970 = vsub.f32 %v479, %v969
        %v971 = vmul.f32 %v970, 0.713
        %v972 = vadd.f32 %v971, 0.5
        %v973 = vsub.f32 %v481, %v969
        %v974 = vmul.f32 %v973, 0.564
        %v975 = vadd.f32 %v974, 0.5
        %v976 = vmul.f32 %v469, 0.299
        %v977 = vmul.f32 %v470, 0.587
        %v978 = vadd.f32 %v976, %v977
        %v979 = vmul.f32 %v471, 0.114
        %v980 = vadd.f32 %v978, %v979
        %v981 = vsub.f32 %v469, %v980
        %v982 = vmul.f32 %v981, 0.713
        %v983 = vadd.f32 %v982, 0.5
        %v984 = vsub.f32 %v471, %v980
        %v985 = vmul.f32 %v984, 0.564
        %v986 = vadd.f32 %v985, 0.5
        %v987 = vmax.f32 %v469, %v472
        %v988 = vmax.f32 %v470, %v473
        %v989 = vmax.f32 %v471, %v474
        %v990 = vsub.f32 %v479, %v987
        %v991 = vsub.f32 %v480, %v988
        %v992 = vsub.f32 %v481, %v989
        %v993 = vand.u32 2147483647, %v990
        %v994 = vand.u32 2147483647, %v991
        %v995 = vand.u32 2147483647, %v992
        %v996 = vadd.f32 %v993, %v994
        %v997 = vadd.f32 %v996, %v995
        %998 = vadd.xlane.f32.xlu0 %v997
        %v999 = vpop.xlane.xlu0 %998
        %v1000 = vrot.slane %v999, 4
        %v1001 = vadd.f32 %v999, %v1000
        %v1002 = vrot.slane %v1001, 2
        %v1003 = vadd.f32 %v1001, %v1002
        %v1004 = vrot.slane %v1003, 1
        %v1005 = vadd.f32 %v1003, %v1004
        %s1006 = vtos %v1005
        %v1007 = vadd.f32 %v959, %v960
        %v1008 = vadd.f32 %v1007, %v961
        %1009 = vadd.xlane.f32.xlu0 %v1008
        %v1010 = vpop.xlane.xlu0 %1009
        %v1011 = vrot.slane %v1010, 4
        %v1012 = vadd.f32 %v1010, %v1011
        %v1013 = vrot.slane %v1012, 2
        %v1014 = vadd.f32 %v1012, %v1013
        %v1015 = vrot.slane %v1014, 1
        %v1016 = vadd.f32 %v1014, %v1015
        %s1017 = vtos %v1016
        %v1018 = vadd.f32 %v962, %v963
        %v1019 = vadd.f32 %v1018, %v964
        %1020 = vadd.xlane.f32.xlu0 %v1019
        %v1021 = vpop.xlane.xlu0 %1020
        %v1022 = vrot.slane %v1021, 4
        %v1023 = vadd.f32 %v1021, %v1022
        %v1024 = vrot.slane %v1023, 2
        %v1025 = vadd.f32 %v1023, %v1024
        %v1026 = vrot.slane %v1025, 1
        %v1027 = vadd.f32 %v1025, %v1026
        %s1028 = vtos %v1027
        %v1029 = vsub.f32 %v975, %v986
        %v1030 = vand.u32 2147483647, %v1029
        %1031 = vadd.xlane.f32.xlu0 %v1030
        %v1032 = vpop.xlane.xlu0 %1031
        %v1033 = vrot.slane %v1032, 4
        %v1034 = vadd.f32 %v1032, %v1033
        %v1035 = vrot.slane %v1034, 2
        %v1036 = vadd.f32 %v1034, %v1035
        %v1037 = vrot.slane %v1036, 1
        %v1038 = vadd.f32 %v1036, %v1037
        %s1039 = vtos %v1038
        %v1040 = vsub.f32 %v972, %v983
        %v1041 = vand.u32 2147483647, %v1040
        %1042 = vadd.xlane.f32.xlu0 %v1041
        %v1043 = vpop.xlane.xlu0 %1042
        %v1044 = vrot.slane %v1043, 4
        %v1045 = vadd.f32 %v1043, %v1044
        %v1046 = vrot.slane %v1045, 2
        %v1047 = vadd.f32 %v1045, %v1046
        %v1048 = vrot.slane %v1047, 1
        %v1049 = vadd.f32 %v1047, %v1048
        %s1050 = vtos %v1049
        %vm1051 = vmand %vm620, %vm622
        %v1052 = vstv %s1006
        %v1053 = vsel %vm1051, %v1052, 0.0
        %vm1054 = vcmp.eq.s32.totalorder %v619, 1
        %vm1055 = vmand %vm620, %vm1054
        %v1056 = vstv %s1017
        %v1057 = vsel %vm1055, %v1056, %v1053
        %vm1058 = vcmp.eq.s32.totalorder %v619, 2
        %vm1059 = vmand %vm620, %vm1058
        %v1060 = vstv %s1028
        %v1061 = vsel %vm1059, %v1060, %v1057
        %vm1062 = vcmp.eq.s32.totalorder %v619, 3
        %vm1063 = vmand %vm620, %vm1062
        %v1064 = vstv %s1039
        %v1065 = vsel %vm1063, %v1064, %v1061
        %vm1066 = vcmp.eq.s32.totalorder %v619, 4
        %vm1067 = vmand %vm620, %vm1066
        %v1068 = vstv %s1050
        %v1069 = vsel %vm1067, %v1068, %v1065
        %1070 = vst [vmem:[%s459] sm:$0xff] %v1069
        %s1071 = sand.u32 %s187, 1
        %s1072 = scalar_lea.sflag [#allocation6], %s1071
        %s1073 = sand.u32 %s187, 1
        %s1074 = smul.addr %s1073, 8
        %s1075 = scalar_lea.vmem [#allocation9], %s1074
        // Predicated region
        $region125: #{tpu_custom_call.1} parent=107 // pred_check
          %p1076 = pneg %p197
        $region126: #{tpu_custom_call.1} parent=107 // pred_check_branch
          %1078 = sbr.rel (%p1076) target = $region128
        $region127: #{tpu_custom_call.1} parent=107 // pred_region
          %s1080 = ssub.s32 128, 128
          %1081 = vsyncadd %s1072, %s1080
          %s1082 = smul.addr %s29, 2
          %s1083 = sadd.s32 %s30, %s1082
          %s1084 = smul.addr %s1083, 128
          %s1085 = scalar_lea.hbm %s5, %s1084
          %s1087 = sshll.u32 %s1075, 4
          %s1088 = int_to_ptr.vmem [resolvable:$true] %s1087
          %1090 = dma.vmem_to_hbm [thread:$0]  %s1088, 128, %s1085, %s1072
        $region128: #{tpu_custom_call.1} parent=107 // pred_fallthru
          _
      $region108: #{tpu_custom_call.1} parent=5 // pred_fallthru
        _
      %p1091 = scmp.le.s32.totalorder 2, %s20
      // Predicated region
      $region129: #{tpu_custom_call.1} parent=5 // pred_check
        %p1092 = pneg %p1091
      $region130: #{tpu_custom_call.1} parent=5 // pred_check_branch
        %1094 = sbr.rel (%p1092) target = $region132
      $region131: #{tpu_custom_call.1} parent=5 // pred_region
        %s1095 = ssub.s32 %s20, 2
        // Predicated region
        $region133: #{tpu_custom_call.1} parent=131 // pred_check
          %p1096 = pneg %p203
        $region134: #{tpu_custom_call.1} parent=131 // pred_check_branch
          %1098 = sbr.rel (%p1096) target = $region136
        $region135: #{tpu_custom_call.1} parent=131 // pred_region
          %s1099 = sand.u32 %s188, 1
          %s1100 = scalar_lea.sflag [#allocation6], %s1099
          %s1101 = sand.u32 %s188, 1
          %s1102 = smul.addr %s1101, 8
          %s1103 = scalar_lea.vmem [#allocation9], %s1102
          %1104 = dma.done %s1100, 128
        $region136: #{tpu_custom_call.1} parent=131 // pred_fallthru
          _
      $region132: #{tpu_custom_call.1} parent=5 // pred_fallthru
        _
    $region6: #{tpu_custom_call.1} parent=1 // loop_footer
      %s24 = sadd.s32 1, %s20
    $region7: #{tpu_custom_call.1} parent=1 // loop_footer_branch
      %19 = sbr.rel target = $region3
    $region8: #{tpu_custom_call.1} parent=1 // loop_exit
      _
    %1105 = vsyncpa [#allocation5], 1
    %s1106 = scalar_lea.sflag [#allocation5], 1
    %1107 = vsyncpa %s1106, 1
    %1108 = vsyncpa [#allocation8], 1
    %s1109 = scalar_lea.sflag [#allocation8], 1
    %1110 = vsyncpa %s1109, 1
    %1111 = vsyncpa [#allocation6], 1
    %s1112 = scalar_lea.sflag [#allocation6], 1
    %1113 = vsyncpa %s1112, 1

</llo_original>
